<compile_context>
chip_gen: v7x
topology: tpu7x:2x2x1
jax: 0.10.0
libtpu: 0.0.40
codegen_flags: <defaults>
</compile_context>

<pallas_src>
import math
from functools import partial

import jax
import jax.numpy as jnp
from jax import lax
from jax.experimental import pallas as pl
from jax.experimental.pallas import tpu as pltpu

LN_EPS = 1e-12  # BertLayerNorm eps used by UNITER


# --------------------------------------------------------------------------
# small helpers
# --------------------------------------------------------------------------
def _layer_norm(x, gamma, beta):
    mean = jnp.mean(x, axis=-1, keepdims=True)
    var = jnp.mean(jnp.square(x - mean), axis=-1, keepdims=True)
    return (x - mean) * lax.rsqrt(var + LN_EPS) * gamma + beta


def _gelu(x):
    # UNITER's BERT gelu: x * 0.5 * (1 + erf(x / sqrt(2)))
    return x * 0.5 * (1.0 + lax.erf(x * (1.0 / math.sqrt(2.0))))


def _row_tile(m):
    """Largest row tile (multiple of 8, <= 512) that divides m."""
    for cand in (512, 256, 128, 64, 32, 16, 8):
        if m % cand == 0:
            return cand
    return m


def _head_block(num_heads, seq):
    """Heads per attention grid step, bounding the f32 score tensors ~8 MiB."""
    budget = 8 * 1024 * 1024
    per_head = 3 * seq * seq * 4
    hb = max(1, min(num_heads, budget // max(per_head, 1)))
    while num_heads % hb:
        hb -= 1
    return hb


def _vmem_limit(bytes_estimate):
    # 2x headroom, clamp to [32 MiB, 64 MiB] so it is safe on v5e/v6e/v7x.
    return int(min(64 * 1024 * 1024, max(32 * 1024 * 1024, 2 * int(bytes_estimate))))


# --------------------------------------------------------------------------
# kernels
# --------------------------------------------------------------------------
def qkv_proj_kernel(x_ref, w_ref, b_ref, out_ref):
    """[TM,H] tile @ resident bf16 [H,3H] fused QKV weight (+bias)."""
    x = x_ref[...].astype(jnp.bfloat16)
    y = jnp.dot(x, w_ref[...], preferred_element_type=jnp.float32) + b_ref[...]
    out_ref[...] = y.astype(out_ref.dtype)


def attention_kernel(sm_scale, q_ref, k_ref, v_ref, mask_ref, ctx_ref):
    """Batched-head attention for one (batch, head-block) grid point."""
    q = q_ref[0]                      # [HB, S, dh] bf16
    k = k_ref[0]
    v = v_ref[0]
    scores = jnp.einsum('hqd,hkd->hqk', q, k,
                        preferred_element_type=jnp.float32) * sm_scale
    scores = scores + mask_ref[...]   # [1,1,S] additive mask, broadcast
    m = jnp.max(scores, axis=-1, keepdims=True)
    e = jnp.exp(scores - m)
    denom = jnp.sum(e, axis=-1, keepdims=True)
    probs = (e * pl.reciprocal(denom, approx=True)).astype(v.dtype)
    ctx = jnp.einsum('hqk,hkd->hqd', probs, v,
                     preferred_element_type=jnp.float32)
    ctx_ref[0] = ctx.astype(ctx_ref.dtype)


def out_ffn_kernel(x_ref, ctx_ref, wo_ref, bo_ref, ln1g_ref, ln1b_ref,
                   wi_ref, bi_ref, wfo_ref, bfo_ref, ln2g_ref, ln2b_ref,
                   out_ref):
    """Attention output projection + add&LN + GELU FFN + add&LN (one row tile)."""
    x = x_ref[...]                                                  # f32 residual
    attn = jnp.dot(ctx_ref[...], wo_ref[...],
                   preferred_element_type=jnp.float32) + bo_ref[...]
    h1 = _layer_norm(attn + x, ln1g_ref[...], ln1b_ref[...])
    inter = _gelu(jnp.dot(h1.astype(jnp.bfloat16), wi_ref[...],
                          preferred_element_type=jnp.float32) + bi_ref[...])
    ffn = jnp.dot(inter.astype(jnp.bfloat16), wfo_ref[...],
                  preferred_element_type=jnp.float32) + bfo_ref[...]
    h2 = _layer_norm(ffn + h1, ln2g_ref[...], ln2b_ref[...])
    out_ref[...] = h2.astype(out_ref.dtype)


# --------------------------------------------------------------------------
# per-layer wrapper
# --------------------------------------------------------------------------
def prepare_layer_params(params):
    """Fuse QKV weights and cast matmul weights to bf16 (done once per layer)."""
    (wq, bq, wk, bk, wv, bv, wao, bao, ln1g, ln1b,
     wi, bi, wfo, bfo, ln2g, ln2b) = params
    bf, f32 = jnp.bfloat16, jnp.float32
    return dict(
        wqkv=jnp.concatenate([wq, wk, wv], axis=1).astype(bf),   # [H, 3H]
        bqkv=jnp.concatenate([bq, bk, bv], axis=1).astype(f32),  # [1, 3H]
        wao=wao.astype(bf), bao=bao.astype(f32),
        ln1g=ln1g.astype(f32), ln1b=ln1b.astype(f32),
        wi=wi.astype(bf), bi=bi.astype(f32),
        wfo=wfo.astype(bf), bfo=bfo.astype(f32),
        ln2g=ln2g.astype(f32), ln2b=ln2b.astype(f32),
    )


def bert_layer_pallas(x, mask3d, p, num_heads):
    """One BertLayer forward.  x: [B,S,H] f32, mask3d: [B,1,S] additive mask."""
    B, S, H = x.shape
    assert H % num_heads == 0
    nh, dh = num_heads, H // num_heads
    I = p["wi"].shape[1]
    M = B * S
    TM = _row_tile(M)
    HB = _head_block(nh, S)
    bf = jnp.bfloat16

    x2 = x.reshape(M, H)

    # ---- 1. fused QKV projection (row-tiled, weights resident) ------------
    qkv = pl.pallas_call(
        qkv_proj_kernel,
        out_shape=jax.ShapeDtypeStruct((M, 3 * H), bf),
        grid=(M // TM,),
        in_specs=[pl.BlockSpec((TM, H), lambda i: (i, 0)),
                  pl.BlockSpec((H, 3 * H), lambda i: (0, 0)),
                  pl.BlockSpec((1, 3 * H), lambda i: (0, 0))],
        out_specs=pl.BlockSpec((TM, 3 * H), lambda i: (i, 0)),
        compiler_params=pltpu.CompilerParams(
            dimension_semantics=("parallel",),
            vmem_limit_bytes=_vmem_limit(
                2 * H * 3 * H + 4 * 3 * H + 2 * (4 * TM * H + 2 * TM * 3 * H))),
        cost_estimate=pl.CostEstimate(
            flops=int(2 * M * H * 3 * H),
            transcendentals=0,
            bytes_accessed=int(4 * M * H + 2 * H * 3 * H + 2 * M * 3 * H)),
    )(x2, p["wqkv"], p["bqkv"])

    # head split (pure layout) in plain XLA, outside the kernels
    def split_heads(t):
        return t.reshape(B, S, nh, dh).transpose(0, 2, 1, 3)     # [B, nh, S, dh]
    q4 = split_heads(qkv[:, 0 * H:1 * H])
    k4 = split_heads(qkv[:, 1 * H:2 * H])
    v4 = split_heads(qkv[:, 2 * H:3 * H])

    # ---- 2. multi-head self-attention (grid over batch x head-blocks) -----
    sm_scale = 1.0 / math.sqrt(dh)
    ctx4 = pl.pallas_call(
        partial(attention_kernel, sm_scale),
        out_shape=jax.ShapeDtypeStruct((B, nh, S, dh), bf),
        grid=(B, nh // HB),
        in_specs=[pl.BlockSpec((1, HB, S, dh), lambda b, h: (b, h, 0, 0)),
                  pl.BlockSpec((1, HB, S, dh), lambda b, h: (b, h, 0, 0)),
                  pl.BlockSpec((1, HB, S, dh), lambda b, h: (b, h, 0, 0)),
                  pl.BlockSpec((1, 1, S), lambda b, h: (b, 0, 0))],
        out_specs=pl.BlockSpec((1, HB, S, dh), lambda b, h: (b, h, 0, 0)),
        compiler_params=pltpu.CompilerParams(
            dimension_semantics=("parallel", "parallel"),
            vmem_limit_bytes=_vmem_limit(
                8 * 2 * HB * S * dh + 2 * 4 * S + 3 * 4 * HB * S * S)),
        cost_estimate=pl.CostEstimate(
            flops=int(4 * B * S * S * H),
            transcendentals=int(B * nh * S * S),
            bytes_accessed=int(4 * 2 * B * S * H + 4 * B * S)),
    )(q4, k4, v4, mask3d)

    ctx2 = ctx4.transpose(0, 2, 1, 3).reshape(M, H)              # concat heads

    # ---- 3. output proj + add&LN + GELU FFN + add&LN (row-tiled) ----------
    out2 = pl.pallas_call(
        out_ffn_kernel,
        out_shape=jax.ShapeDtypeStruct((M, H), x.dtype),
        grid=(M // TM,),
        in_specs=[pl.BlockSpec((TM, H), lambda i: (i, 0)),       # residual x (f32)
                  pl.BlockSpec((TM, H), lambda i: (i, 0)),       # ctx (bf16)
                  pl.BlockSpec((H, H), lambda i: (0, 0)),        # wao
                  pl.BlockSpec((1, H), lambda i: (0, 0)),        # bao
                  pl.BlockSpec((1, H), lambda i: (0, 0)),        # ln1 gamma
                  pl.BlockSpec((1, H), lambda i: (0, 0)),        # ln1 beta
                  pl.BlockSpec((H, I), lambda i: (0, 0)),        # wi
                  pl.BlockSpec((1, I), lambda i: (0, 0)),        # bi
                  pl.BlockSpec((I, H), lambda i: (0, 0)),        # wfo
                  pl.BlockSpec((1, H), lambda i: (0, 0)),        # bfo
                  pl.BlockSpec((1, H), lambda i: (0, 0)),        # ln2 gamma
                  pl.BlockSpec((1, H), lambda i: (0, 0))],       # ln2 beta
        out_specs=pl.BlockSpec((TM, H), lambda i: (i, 0)),
        compiler_params=pltpu.CompilerParams(
            dimension_semantics=("parallel",),
            vmem_limit_bytes=_vmem_limit(
                2 * (H * H + 2 * H * I) + 4 * (6 * H + 2 * I)
                + 2 * (4 * TM * H + 2 * TM * H + 4 * TM * H) + 2 * 4 * TM * I)),
        cost_estimate=pl.CostEstimate(
            flops=int(2 * M * (H * H + 2 * H * I)),
            transcendentals=int(M * I),
            bytes_accessed=int(2 * M * H + 4 * M * H
                               + 2 * (H * H + 2 * H * I) + 4 * M * H)),
    )(x2, ctx2, p["wao"], p["bao"], p["ln1g"], p["ln1b"],
      p["wi"], p["bi"], p["wfo"], p["bfo"], p["ln2g"], p["ln2b"])

    return out2.reshape(B, S, H)


# --------------------------------------------------------------------------
# encoder (mirrors UniterEncoder.forward)
# --------------------------------------------------------------------------
def uniter_encoder_forward(input_, attention_mask, layer_params, num_heads,
                           frozen_en_layer=0, output_all_encoded_layers=True):
    """input_: [B,S,H]; attention_mask: [B,1,1,S] additive extended mask."""
    B, S, _ = input_.shape
    mask3d = attention_mask.reshape(B, 1, S).astype(jnp.float32)
    # NOTE: frozen_en_layer only controls torch.no_grad (gradients); forward
    # values are identical, so it is a no-op here.
    # TODO(synk): hide the next layer's weight DMA behind the current layer's
    # compute via a cross-pallas_call prefetch future.
    all_encoder_layers = []
    hidden_states = input_
    for params in layer_params:
        p = prepare_layer_params(params)
        hidden_states = bert_layer_pallas(hidden_states, mask3d, p, num_heads)
        if output_all_encoded_layers:
            all_encoder_layers.append(hidden_states)
    if not output_all_encoded_layers:
        all_encoder_layers.append(hidden_states)
    return all_encoder_layers


# --------------------------------------------------------------------------
# pure-JAX f32 reference (for a loose correctness check)
# --------------------------------------------------------------------------
def bert_layer_reference(x, mask_ext, params, num_heads):
    (wq, bq, wk, bk, wv, bv, wao, bao, ln1g, ln1b,
     wi, bi, wfo, bfo, ln2g, ln2b) = params
    B, S, H = x.shape
    dh = H // num_heads
    x2 = x.reshape(B * S, H)

    def heads(t):
        return t.reshape(B, S, num_heads, dh).transpose(0, 2, 1, 3)

    q = heads(x2 @ wq + bq)
    k = heads(x2 @ wk + bk)
    v = heads(x2 @ wv + bv)
    scores = jnp.einsum('bhqd,bhkd->bhqk', q, k) / math.sqrt(dh) + mask_ext
    probs = jax.nn.softmax(scores, axis=-1)
    ctx = jnp.einsum('bhqk,bhkd->bhqd', probs, v).transpose(0, 2, 1, 3).reshape(B * S, H)
    h1 = _layer_norm(ctx @ wao + bao + x2, ln1g, ln1b)
    inter = _gelu(h1 @ wi + bi)
    h2 = _layer_norm(inter @ wfo + bfo + h1, ln2g, ln2b)
    return h2.reshape(B, S, H)


def init_layer_params(key, hidden, intermediate, std=0.02):
    ks = jax.random.split(key, 10)
    n = lambda k, shape: (jax.random.normal(k, shape, jnp.float32) * std)
    wq, bq = n(ks[0], (hidden, hidden)), n(ks[1], (1, hidden))
    wk, bk = n(ks[2], (hidden, hidden)), n(ks[3], (1, hidden))
    wv, bv = n(ks[4], (hidden, hidden)), n(ks[5], (1, hidden))
    wao, bao = n(ks[6], (hidden, hidden)), jnp.zeros((1, hidden), jnp.float32)
    ln1g, ln1b = jnp.ones((1, hidden), jnp.float32), jnp.zeros((1, hidden), jnp.float32)
    wi, bi = n(ks[7], (hidden, intermediate)), n(ks[8], (1, intermediate))
    wfo, bfo = n(ks[9], (intermediate, hidden)), jnp.zeros((1, hidden), jnp.float32)
    ln2g, ln2b = jnp.ones((1, hidden), jnp.float32), jnp.zeros((1, hidden), jnp.float32)
    return (wq, bq, wk, bk, wv, bv, wao, bao, ln1g, ln1b,
            wi, bi, wfo, bfo, ln2g, ln2b)


if __name__ == "__main__":
    B, S, H = 2, 8, 32          # batch, seq, hidden
    NUM_HEADS = 4               # head_dim = 8
    INTERMEDIATE = 64
    NUM_LAYERS = 2

    key = jax.random.PRNGKey(0)
    kx, kp = jax.random.split(key, 2)

    x = jax.random.normal(kx, (B, S, H), jnp.float32)

    # binary attention mask (1 = token, 0 = pad); batch 1 has 3 padded tokens.
    bin_mask = jnp.ones((B, S), jnp.float32).at[1, 5:].set(0.0)
    # UNITER-style extended additive mask [B, 1, 1, S]
    attention_mask = ((1.0 - bin_mask) * -10000.0)[:, None, None, :]

    layer_params = [
        init_layer_params(jax.random.fold_in(kp, l), H, INTERMEDIATE)
        for l in range(NUM_LAYERS)
    ]

    fwd = jax.jit(partial(uniter_encoder_forward, num_heads=NUM_HEADS,
                          frozen_en_layer=0, output_all_encoded_layers=True))
    outs = fwd(x, attention_mask, layer_params)
    outs = [jax.block_until_ready(o) for o in outs]
    assert len(outs) == NUM_LAYERS and outs[-1].shape == (B, S, H)

    # loose correctness check vs. f32 reference (bf16 matmuls inside kernels)
    ref = x
    for params in layer_params:
        ref = bert_layer_reference(ref, attention_mask, params, NUM_HEADS)
    max_err = float(jnp.max(jnp.abs(outs[-1] - ref)))
    assert max_err < 5e-2, f"max abs err too large: {max_err}"

    print("KERNEL_OK")
</pallas_src>

<mosaic_0001>
module attributes {stable_mosaic.version = 11 : i64} {
  func.func @qkv_proj_kernel(%arg0: i32, %arg1: memref<16x32xf32, #tpu.memory_space<vmem>>, %arg2: memref<32x96xbf16, #tpu.memory_space<vmem>>, %arg3: memref<1x96xf32, #tpu.memory_space<vmem>>, %arg4: memref<16x96xbf16, #tpu.memory_space<vmem>>) attributes {dimension_semantics = [#tpu.dimension_semantics<parallel>], iteration_bounds = array<i64: 1>, scalar_prefetch = 0 : i64, scratch_operands = 0 : i64, tpu.core_type = #tpu.core_type<tc>, window_params = [{transform_indices = @transform_0, window_bounds = array<i64: 16, 32>}, {pipeline_mode = #tpu.pipeline_mode<synchronous>, transform_indices = @transform_1, window_bounds = array<i64: 32, 96>}, {pipeline_mode = #tpu.pipeline_mode<synchronous>, transform_indices = @transform_2, window_bounds = array<i64: 1, 96>}, {transform_indices = @transform_3, window_bounds = array<i64: 16, 96>}]} {
    %c0 = arith.constant 0 : index
    %c0_0 = arith.constant 0 : index
    %0 = vector.load %arg1[%c0, %c0_0] : memref<16x32xf32, #tpu.memory_space<vmem>>, vector<16x32xf32>
    %1 = arith.truncf %0 : vector<16x32xf32> to vector<16x32xbf16>
    %c0_1 = arith.constant 0 : index
    %c0_2 = arith.constant 0 : index
    %2 = vector.load %arg2[%c0_1, %c0_2] : memref<32x96xbf16, #tpu.memory_space<vmem>>, vector<32x96xbf16>
    %cst = arith.constant dense<0.000000e+00> : vector<16x96xf32>
    %3 = tpu.matmul %1, %2, %cst {dimension_numbers = #tpu.dot_dimension_numbers<[1], [0], [0], [1], [0, 0, 1, 1], [], []>} : vector<16x32xbf16>, vector<32x96xbf16>, vector<16x96xf32> -> vector<16x96xf32>
    %c0_3 = arith.constant 0 : index
    %c0_4 = arith.constant 0 : index
    %4 = vector.load %arg3[%c0_3, %c0_4] : memref<1x96xf32, #tpu.memory_space<vmem>>, vector<1x96xf32>
    %5 = vector.broadcast %4 : vector<1x96xf32> to vector<16x96xf32>
    %6 = arith.addf %3, %5 : vector<16x96xf32>
    %7 = arith.truncf %6 : vector<16x96xf32> to vector<16x96xbf16>
    %c0_5 = arith.constant 0 : index
    %c0_6 = arith.constant 0 : index
    %8 = vector.load %arg4[%c0_5, %c0_6] : memref<16x96xbf16, #tpu.memory_space<vmem>>, vector<16x96xbf16>
    tpu.vector_store %arg4[%c0_5, %c0_6], %7 {strides = array<i32>} : memref<16x96xbf16, #tpu.memory_space<vmem>>, vector<16x96xbf16>,
    return
  }
  func.func @transform_0(%arg0: i32) -> (i32, i32) {
    %c0_i32 = arith.constant 0 : i32
    %c0_i32_0 = arith.constant 0 : i32
    return %arg0, %c0_i32 : i32, i32
  }
  func.func @transform_1(%arg0: i32) -> (i32, i32) {
    %c0_i32 = arith.constant 0 : i32
    %c0_i32_0 = arith.constant 0 : i32
    %c0_i32_1 = arith.constant 0 : i32
    return %c0_i32, %c0_i32_0 : i32, i32
  }
  func.func @transform_2(%arg0: i32) -> (i32, i32) {
    %c0_i32 = arith.constant 0 : i32
    %c0_i32_0 = arith.constant 0 : i32
    %c0_i32_1 = arith.constant 0 : i32
    return %c0_i32, %c0_i32_0 : i32, i32
  }
  func.func @transform_3(%arg0: i32) -> (i32, i32) {
    %c0_i32 = arith.constant 0 : i32
    %c0_i32_0 = arith.constant 0 : i32
    return %arg0, %c0_i32 : i32, i32
  }
}

module attributes {stable_mosaic.version = 11 : i64} {
  func.func @attention_kernel(%arg0: i32, %arg1: i32, %arg2: memref<1x4x8x8xbf16, #tpu.memory_space<vmem>>, %arg3: memref<1x4x8x8xbf16, #tpu.memory_space<vmem>>, %arg4: memref<1x4x8x8xbf16, #tpu.memory_space<vmem>>, %arg5: memref<1x1x8xf32, #tpu.memory_space<vmem>>, %arg6: memref<1x4x8x8xbf16, #tpu.memory_space<vmem>>) attributes {dimension_semantics = [#tpu.dimension_semantics<parallel>, #tpu.dimension_semantics<parallel>], iteration_bounds = array<i64: 2, 1>, scalar_prefetch = 0 : i64, scratch_operands = 0 : i64, tpu.core_type = #tpu.core_type<tc>, window_params = [{transform_indices = @transform_0, window_bounds = array<i64: 1, 4, 8, 8>}, {transform_indices = @transform_1, window_bounds = array<i64: 1, 4, 8, 8>}, {transform_indices = @transform_2, window_bounds = array<i64: 1, 4, 8, 8>}, {transform_indices = @transform_3, window_bounds = array<i64: 1, 1, 8>}, {transform_indices = @transform_4, window_bounds = array<i64: 1, 4, 8, 8>}]} {
    %c0 = arith.constant 0 : index
    %c0_0 = arith.constant 0 : index
    %c0_1 = arith.constant 0 : index
    %c0_2 = arith.constant 0 : index
    %0 = vector.load %arg2[%c0, %c0_0, %c0_1, %c0_2] : memref<1x4x8x8xbf16, #tpu.memory_space<vmem>>, vector<1x4x8x8xbf16>
    %1 = vector.shape_cast %0 : vector<1x4x8x8xbf16> to vector<4x8x8xbf16>
    %c0_3 = arith.constant 0 : index
    %c0_4 = arith.constant 0 : index
    %c0_5 = arith.constant 0 : index
    %c0_6 = arith.constant 0 : index
    %2 = vector.load %arg3[%c0_3, %c0_4, %c0_5, %c0_6] : memref<1x4x8x8xbf16, #tpu.memory_space<vmem>>, vector<1x4x8x8xbf16>
    %3 = vector.shape_cast %2 : vector<1x4x8x8xbf16> to vector<4x8x8xbf16>
    %c0_7 = arith.constant 0 : index
    %c0_8 = arith.constant 0 : index
    %c0_9 = arith.constant 0 : index
    %c0_10 = arith.constant 0 : index
    %4 = vector.load %arg4[%c0_7, %c0_8, %c0_9, %c0_10] : memref<1x4x8x8xbf16, #tpu.memory_space<vmem>>, vector<1x4x8x8xbf16>
    %5 = vector.shape_cast %4 : vector<1x4x8x8xbf16> to vector<4x8x8xbf16>
    "tpu.trace_start"() <{level = 10 : i32, message = "hqd,hkd->hqk"}> : () -> ()
    %cst = arith.constant dense<0.000000e+00> : vector<4x8x8xf32>
    %6 = tpu.matmul %1, %3, %cst {dimension_numbers = #tpu.dot_dimension_numbers<[2], [2], [1], [1], [0, 0, 0, 1, 1, 1], [0], [0]>} : vector<4x8x8xbf16>, vector<4x8x8xbf16>, vector<4x8x8xf32> -> vector<4x8x8xf32>
    "tpu.trace_stop"() : () -> ()
    %cst_11 = arith.constant 0.353553385 : f32
    %7 = vector.broadcast %cst_11 : f32 to vector<4x8x8xf32>
    %8 = arith.mulf %6, %7 : vector<4x8x8xf32>
    %c0_12 = arith.constant 0 : index
    %c0_13 = arith.constant 0 : index
    %c0_14 = arith.constant 0 : index
    %9 = vector.load %arg5[%c0_12, %c0_13, %c0_14] : memref<1x1x8xf32, #tpu.memory_space<vmem>>, vector<1x1x8xf32>
    %10 = vector.broadcast %9 : vector<1x1x8xf32> to vector<4x8x8xf32>
    %11 = arith.addf %8, %10 : vector<4x8x8xf32>
    %cst_15 = arith.constant dense<0xFF800000> : vector<4x8xf32>
    %12 = vector.multi_reduction <maximumf>, %11, %cst_15 [2] : vector<4x8x8xf32> to vector<4x8xf32>
    %13 = vector.shape_cast %12 : vector<4x8xf32> to vector<4x8x1xf32>
    %14 = vector.broadcast %13 : vector<4x8x1xf32> to vector<4x8x8xf32>
    %15 = arith.subf %11, %14 : vector<4x8x8xf32>
    %16 = math.exp %15 : vector<4x8x8xf32>
    %cst_16 = arith.constant dense<0.000000e+00> : vector<4x8xf32>
    %17 = vector.multi_reduction <add>, %16, %cst_16 [2] : vector<4x8x8xf32> to vector<4x8xf32>
    %18 = vector.shape_cast %17 : vector<4x8xf32> to vector<4x8x1xf32>
    %19 = tpu.reciprocal %18 {approx = true} : vector<4x8x1xf32> -> vector<4x8x1xf32>
    %20 = vector.broadcast %19 : vector<4x8x1xf32> to vector<4x8x8xf32>
    %21 = arith.mulf %16, %20 : vector<4x8x8xf32>
    %22 = arith.truncf %21 : vector<4x8x8xf32> to vector<4x8x8xbf16>
    "tpu.trace_start"() <{level = 10 : i32, message = "hqk,hkd->hqd"}> : () -> ()
    %cst_17 = arith.constant dense<0.000000e+00> : vector<4x8x8xf32>
    %23 = tpu.matmul %22, %5, %cst_17 {dimension_numbers = #tpu.dot_dimension_numbers<[2], [1], [1], [2], [0, 0, 0, 1, 1, 2], [0], [0]>} : vector<4x8x8xbf16>, vector<4x8x8xbf16>, vector<4x8x8xf32> -> vector<4x8x8xf32>
    "tpu.trace_stop"() : () -> ()
    %24 = arith.truncf %23 : vector<4x8x8xf32> to vector<4x8x8xbf16>
    %c0_18 = arith.constant 0 : index
    %c0_19 = arith.constant 0 : index
    %c0_20 = arith.constant 0 : index
    %c0_21 = arith.constant 0 : index
    %25 = vector.load %arg6[%c0_18, %c0_19, %c0_20, %c0_21] : memref<1x4x8x8xbf16, #tpu.memory_space<vmem>>, vector<1x4x8x8xbf16>
    %26 = vector.shape_cast %25 : vector<1x4x8x8xbf16> to vector<4x8x8xbf16>
    %27 = vector.shape_cast %24 : vector<4x8x8xbf16> to vector<1x4x8x8xbf16>
    tpu.vector_store %arg6[%c0_18, %c0_19, %c0_20, %c0_21], %27 {strides = array<i32>} : memref<1x4x8x8xbf16, #tpu.memory_space<vmem>>, vector<1x4x8x8xbf16>,
    return
  }
  func.func @transform_0(%arg0: i32, %arg1: i32) -> (i32, i32, i32, i32) {
    %c0_i32 = arith.constant 0 : i32
    %c0_i32_0 = arith.constant 0 : i32
    %c0_i32_1 = arith.constant 0 : i32
    return %arg0, %arg1, %c0_i32, %c0_i32_0 : i32, i32, i32, i32
  }
  func.func @transform_1(%arg0: i32, %arg1: i32) -> (i32, i32, i32, i32) {
    %c0_i32 = arith.constant 0 : i32
    %c0_i32_0 = arith.constant 0 : i32
    %c0_i32_1 = arith.constant 0 : i32
    return %arg0, %arg1, %c0_i32, %c0_i32_0 : i32, i32, i32, i32
  }
  func.func @transform_2(%arg0: i32, %arg1: i32) -> (i32, i32, i32, i32) {
    %c0_i32 = arith.constant 0 : i32
    %c0_i32_0 = arith.constant 0 : i32
    %c0_i32_1 = arith.constant 0 : i32
    return %arg0, %arg1, %c0_i32, %c0_i32_0 : i32, i32, i32, i32
  }
  func.func @transform_3(%arg0: i32, %arg1: i32) -> (i32, i32, i32) {
    %c0_i32 = arith.constant 0 : i32
    %c0_i32_0 = arith.constant 0 : i32
    %c0_i32_1 = arith.constant 0 : i32
    return %arg0, %c0_i32, %c0_i32_0 : i32, i32, i32
  }
  func.func @transform_4(%arg0: i32, %arg1: i32) -> (i32, i32, i32, i32) {
    %c0_i32 = arith.constant 0 : i32
    %c0_i32_0 = arith.constant 0 : i32
    %c0_i32_1 = arith.constant 0 : i32
    return %arg0, %arg1, %c0_i32, %c0_i32_0 : i32, i32, i32, i32
  }
}

module attributes {stable_mosaic.version = 11 : i64} {
  func.func @out_ffn_kernel(%arg0: i32, %arg1: memref<16x32xf32, #tpu.memory_space<vmem>>, %arg2: memref<16x32xbf16, #tpu.memory_space<vmem>>, %arg3: memref<32x32xbf16, #tpu.memory_space<vmem>>, %arg4: memref<1x32xf32, #tpu.memory_space<vmem>>, %arg5: memref<1x32xf32, #tpu.memory_space<vmem>>, %arg6: memref<1x32xf32, #tpu.memory_space<vmem>>, %arg7: memref<32x64xbf16, #tpu.memory_space<vmem>>, %arg8: memref<1x64xf32, #tpu.memory_space<vmem>>, %arg9: memref<64x32xbf16, #tpu.memory_space<vmem>>, %arg10: memref<1x32xf32, #tpu.memory_space<vmem>>, %arg11: memref<1x32xf32, #tpu.memory_space<vmem>>, %arg12: memref<1x32xf32, #tpu.memory_space<vmem>>, %arg13: memref<16x32xf32, #tpu.memory_space<vmem>>) attributes {dimension_semantics = [#tpu.dimension_semantics<parallel>], iteration_bounds = array<i64: 1>, scalar_prefetch = 0 : i64, scratch_operands = 0 : i64, tpu.core_type = #tpu.core_type<tc>, window_params = [{transform_indices = @transform_0, window_bounds = array<i64: 16, 32>}, {transform_indices = @transform_1, window_bounds = array<i64: 16, 32>}, {pipeline_mode = #tpu.pipeline_mode<synchronous>, transform_indices = @transform_2, window_bounds = array<i64: 32, 32>}, {pipeline_mode = #tpu.pipeline_mode<synchronous>, transform_indices = @transform_3, window_bounds = array<i64: 1, 32>}, {pipeline_mode = #tpu.pipeline_mode<synchronous>, transform_indices = @transform_4, window_bounds = array<i64: 1, 32>}, {pipeline_mode = #tpu.pipeline_mode<synchronous>, transform_indices = @transform_5, window_bounds = array<i64: 1, 32>}, {pipeline_mode = #tpu.pipeline_mode<synchronous>, transform_indices = @transform_6, window_bounds = array<i64: 32, 64>}, {pipeline_mode = #tpu.pipeline_mode<synchronous>, transform_indices = @transform_7, window_bounds = array<i64: 1, 64>}, {pipeline_mode = #tpu.pipeline_mode<synchronous>, transform_indices = @transform_8, window_bounds = array<i64: 64, 32>}, {pipeline_mode = #tpu.pipeline_mode<synchronous>, transform_indices = @transform_9, window_bounds = array<i64: 1, 32>}, {pipeline_mode = #tpu.pipeline_mode<synchronous>, transform_indices = @transform_10, window_bounds = array<i64: 1, 32>}, {pipeline_mode = #tpu.pipeline_mode<synchronous>, transform_indices = @transform_11, window_bounds = array<i64: 1, 32>}, {transform_indices = @transform_12, window_bounds = array<i64: 16, 32>}]} {
    %c0 = arith.constant 0 : index
    %c0_0 = arith.constant 0 : index
    %0 = vector.load %arg1[%c0, %c0_0] : memref<16x32xf32, #tpu.memory_space<vmem>>, vector<16x32xf32>
    %c0_1 = arith.constant 0 : index
    %c0_2 = arith.constant 0 : index
    %1 = vector.load %arg2[%c0_1, %c0_2] : memref<16x32xbf16, #tpu.memory_space<vmem>>, vector<16x32xbf16>
    %c0_3 = arith.constant 0 : index
    %c0_4 = arith.constant 0 : index
    %2 = vector.load %arg3[%c0_3, %c0_4] : memref<32x32xbf16, #tpu.memory_space<vmem>>, vector<32x32xbf16>
    %cst = arith.constant dense<0.000000e+00> : vector<16x32xf32>
    %3 = tpu.matmul %1, %2, %cst {dimension_numbers = #tpu.dot_dimension_numbers<[1], [0], [0], [1], [0, 0, 1, 1], [], []>} : vector<16x32xbf16>, vector<32x32xbf16>, vector<16x32xf32> -> vector<16x32xf32>
    %c0_5 = arith.constant 0 : index
    %c0_6 = arith.constant 0 : index
    %4 = vector.load %arg4[%c0_5, %c0_6] : memref<1x32xf32, #tpu.memory_space<vmem>>, vector<1x32xf32>
    %5 = vector.broadcast %4 : vector<1x32xf32> to vector<16x32xf32>
    %6 = arith.addf %3, %5 : vector<16x32xf32>
    %7 = arith.addf %6, %0 : vector<16x32xf32>
    %c0_7 = arith.constant 0 : index
    %c0_8 = arith.constant 0 : index
    %8 = vector.load %arg5[%c0_7, %c0_8] : memref<1x32xf32, #tpu.memory_space<vmem>>, vector<1x32xf32>
    %c0_9 = arith.constant 0 : index
    %c0_10 = arith.constant 0 : index
    %9 = vector.load %arg6[%c0_9, %c0_10] : memref<1x32xf32, #tpu.memory_space<vmem>>, vector<1x32xf32>
    %cst_11 = arith.constant dense<0.000000e+00> : vector<16xf32>
    %10 = vector.multi_reduction <add>, %7, %cst_11 [1] : vector<16x32xf32> to vector<16xf32>
    %11 = vector.shape_cast %10 : vector<16xf32> to vector<16x1xf32>
    %cst_12 = arith.constant 3.200000e+01 : f32
    %12 = vector.broadcast %cst_12 : f32 to vector<16x1xf32>
    %13 = arith.divf %11, %12 : vector<16x1xf32>
    %14 = vector.broadcast %13 : vector<16x1xf32> to vector<16x32xf32>
    %15 = arith.subf %7, %14 : vector<16x32xf32>
    %16 = arith.mulf %15, %15 : vector<16x32xf32>
    %cst_13 = arith.constant dense<0.000000e+00> : vector<16xf32>
    %17 = vector.multi_reduction <add>, %16, %cst_13 [1] : vector<16x32xf32> to vector<16xf32>
    %18 = vector.shape_cast %17 : vector<16xf32> to vector<16x1xf32>
    %cst_14 = arith.constant 3.200000e+01 : f32
    %19 = vector.broadcast %cst_14 : f32 to vector<16x1xf32>
    %20 = arith.divf %18, %19 : vector<16x1xf32>
    %21 = vector.broadcast %13 : vector<16x1xf32> to vector<16x32xf32>
    %22 = arith.subf %7, %21 : vector<16x32xf32>
    %cst_15 = arith.constant 9.99999996E-13 : f32
    %23 = vector.broadcast %cst_15 : f32 to vector<16x1xf32>
    %24 = arith.addf %20, %23 : vector<16x1xf32>
    %25 = math.rsqrt %24 : vector<16x1xf32>
    %26 = vector.broadcast %25 : vector<16x1xf32> to vector<16x32xf32>
    %27 = arith.mulf %22, %26 : vector<16x32xf32>
    %28 = vector.broadcast %8 : vector<1x32xf32> to vector<16x32xf32>
    %29 = arith.mulf %27, %28 : vector<16x32xf32>
    %30 = vector.broadcast %9 : vector<1x32xf32> to vector<16x32xf32>
    %31 = arith.addf %29, %30 : vector<16x32xf32>
    %32 = arith.truncf %31 : vector<16x32xf32> to vector<16x32xbf16>
    %c0_16 = arith.constant 0 : index
    %c0_17 = arith.constant 0 : index
    %33 = vector.load %arg7[%c0_16, %c0_17] : memref<32x64xbf16, #tpu.memory_space<vmem>>, vector<32x64xbf16>
    %cst_18 = arith.constant dense<0.000000e+00> : vector<16x64xf32>
    %34 = tpu.matmul %32, %33, %cst_18 {dimension_numbers = #tpu.dot_dimension_numbers<[1], [0], [0], [1], [0, 0, 1, 1], [], []>} : vector<16x32xbf16>, vector<32x64xbf16>, vector<16x64xf32> -> vector<16x64xf32>
    %c0_19 = arith.constant 0 : index
    %c0_20 = arith.constant 0 : index
    %35 = vector.load %arg8[%c0_19, %c0_20] : memref<1x64xf32, #tpu.memory_space<vmem>>, vector<1x64xf32>
    %36 = vector.broadcast %35 : vector<1x64xf32> to vector<16x64xf32>
    %37 = arith.addf %34, %36 : vector<16x64xf32>
    %cst_21 = arith.constant 5.000000e-01 : f32
    %38 = vector.broadcast %cst_21 : f32 to vector<16x64xf32>
    %39 = arith.mulf %37, %38 : vector<16x64xf32>
    %cst_22 = arith.constant 0.707106769 : f32
    %40 = vector.broadcast %cst_22 : f32 to vector<16x64xf32>
    %41 = arith.mulf %37, %40 : vector<16x64xf32>
    %42 = math.erf %41 : vector<16x64xf32>
    %cst_23 = arith.constant 1.000000e+00 : f32
    %43 = vector.broadcast %cst_23 : f32 to vector<16x64xf32>
    %44 = arith.addf %43, %42 : vector<16x64xf32>
    %45 = arith.mulf %39, %44 : vector<16x64xf32>
    %46 = arith.truncf %45 : vector<16x64xf32> to vector<16x64xbf16>
    %c0_24 = arith.constant 0 : index
    %c0_25 = arith.constant 0 : index
    %47 = vector.load %arg9[%c0_24, %c0_25] : memref<64x32xbf16, #tpu.memory_space<vmem>>, vector<64x32xbf16>
    %cst_26 = arith.constant dense<0.000000e+00> : vector<16x32xf32>
    %48 = tpu.matmul %46, %47, %cst_26 {dimension_numbers = #tpu.dot_dimension_numbers<[1], [0], [0], [1], [0, 0, 1, 1], [], []>} : vector<16x64xbf16>, vector<64x32xbf16>, vector<16x32xf32> -> vector<16x32xf32>
    %c0_27 = arith.constant 0 : index
    %c0_28 = arith.constant 0 : index
    %49 = vector.load %arg10[%c0_27, %c0_28] : memref<1x32xf32, #tpu.memory_space<vmem>>, vector<1x32xf32>
    %50 = vector.broadcast %49 : vector<1x32xf32> to vector<16x32xf32>
    %51 = arith.addf %48, %50 : vector<16x32xf32>
    %52 = arith.addf %51, %31 : vector<16x32xf32>
    %c0_29 = arith.constant 0 : index
    %c0_30 = arith.constant 0 : index
    %53 = vector.load %arg11[%c0_29, %c0_30] : memref<1x32xf32, #tpu.memory_space<vmem>>, vector<1x32xf32>
    %c0_31 = arith.constant 0 : index
    %c0_32 = arith.constant 0 : index
    %54 = vector.load %arg12[%c0_31, %c0_32] : memref<1x32xf32, #tpu.memory_space<vmem>>, vector<1x32xf32>
    %cst_33 = arith.constant dense<0.000000e+00> : vector<16xf32>
    %55 = vector.multi_reduction <add>, %52, %cst_33 [1] : vector<16x32xf32> to vector<16xf32>
    %56 = vector.shape_cast %55 : vector<16xf32> to vector<16x1xf32>
    %cst_34 = arith.constant 3.200000e+01 : f32
    %57 = vector.broadcast %cst_34 : f32 to vector<16x1xf32>
    %58 = arith.divf %56, %57 : vector<16x1xf32>
    %59 = vector.broadcast %58 : vector<16x1xf32> to vector<16x32xf32>
    %60 = arith.subf %52, %59 : vector<16x32xf32>
    %61 = arith.mulf %60, %60 : vector<16x32xf32>
    %cst_35 = arith.constant dense<0.000000e+00> : vector<16xf32>
    %62 = vector.multi_reduction <add>, %61, %cst_35 [1] : vector<16x32xf32> to vector<16xf32>
    %63 = vector.shape_cast %62 : vector<16xf32> to vector<16x1xf32>
    %cst_36 = arith.constant 3.200000e+01 : f32
    %64 = vector.broadcast %cst_36 : f32 to vector<16x1xf32>
    %65 = arith.divf %63, %64 : vector<16x1xf32>
    %66 = vector.broadcast %58 : vector<16x1xf32> to vector<16x32xf32>
    %67 = arith.subf %52, %66 : vector<16x32xf32>
    %cst_37 = arith.constant 9.99999996E-13 : f32
    %68 = vector.broadcast %cst_37 : f32 to vector<16x1xf32>
    %69 = arith.addf %65, %68 : vector<16x1xf32>
    %70 = math.rsqrt %69 : vector<16x1xf32>
    %71 = vector.broadcast %70 : vector<16x1xf32> to vector<16x32xf32>
    %72 = arith.mulf %67, %71 : vector<16x32xf32>
    %73 = vector.broadcast %53 : vector<1x32xf32> to vector<16x32xf32>
    %74 = arith.mulf %72, %73 : vector<16x32xf32>
    %75 = vector.broadcast %54 : vector<1x32xf32> to vector<16x32xf32>
    %76 = arith.addf %74, %75 : vector<16x32xf32>
    %c0_38 = arith.constant 0 : index
    %c0_39 = arith.constant 0 : index
    %77 = vector.load %arg13[%c0_38, %c0_39] : memref<16x32xf32, #tpu.memory_space<vmem>>, vector<16x32xf32>
    tpu.vector_store %arg13[%c0_38, %c0_39], %76 {strides = array<i32>} : memref<16x32xf32, #tpu.memory_space<vmem>>, vector<16x32xf32>,
    return
  }
  func.func @transform_0(%arg0: i32) -> (i32, i32) {
    %c0_i32 = arith.constant 0 : i32
    %c0_i32_0 = arith.constant 0 : i32
    return %arg0, %c0_i32 : i32, i32
  }
  func.func @transform_1(%arg0: i32) -> (i32, i32) {
    %c0_i32 = arith.constant 0 : i32
    %c0_i32_0 = arith.constant 0 : i32
    return %arg0, %c0_i32 : i32, i32
  }
  func.func @transform_2(%arg0: i32) -> (i32, i32) {
    %c0_i32 = arith.constant 0 : i32
    %c0_i32_0 = arith.constant 0 : i32
    %c0_i32_1 = arith.constant 0 : i32
    return %c0_i32, %c0_i32_0 : i32, i32
  }
  func.func @transform_3(%arg0: i32) -> (i32, i32) {
    %c0_i32 = arith.constant 0 : i32
    %c0_i32_0 = arith.constant 0 : i32
    %c0_i32_1 = arith.constant 0 : i32
    return %c0_i32, %c0_i32_0 : i32, i32
  }
  func.func @transform_4(%arg0: i32) -> (i32, i32) {
    %c0_i32 = arith.constant 0 : i32
    %c0_i32_0 = arith.constant 0 : i32
    %c0_i32_1 = arith.constant 0 : i32
    return %c0_i32, %c0_i32_0 : i32, i32
  }
  func.func @transform_5(%arg0: i32) -> (i32, i32) {
    %c0_i32 = arith.constant 0 : i32
    %c0_i32_0 = arith.constant 0 : i32
    %c0_i32_1 = arith.constant 0 : i32
    return %c0_i32, %c0_i32_0 : i32, i32
  }
  func.func @transform_6(%arg0: i32) -> (i32, i32) {
    %c0_i32 = arith.constant 0 : i32
    %c0_i32_0 = arith.constant 0 : i32
    %c0_i32_1 = arith.constant 0 : i32
    return %c0_i32, %c0_i32_0 : i32, i32
  }
  func.func @transform_7(%arg0: i32) -> (i32, i32) {
    %c0_i32 = arith.constant 0 : i32
    %c0_i32_0 = arith.constant 0 : i32
    %c0_i32_1 = arith.constant 0 : i32
    return %c0_i32, %c0_i32_0 : i32, i32
  }
  func.func @transform_8(%arg0: i32) -> (i32, i32) {
    %c0_i32 = arith.constant 0 : i32
    %c0_i32_0 = arith.constant 0 : i32
    %c0_i32_1 = arith.constant 0 : i32
    return %c0_i32, %c0_i32_0 : i32, i32
  }
  func.func @transform_9(%arg0: i32) -> (i32, i32) {
    %c0_i32 = arith.constant 0 : i32
    %c0_i32_0 = arith.constant 0 : i32
    %c0_i32_1 = arith.constant 0 : i32
    return %c0_i32, %c0_i32_0 : i32, i32
  }
  func.func @transform_10(%arg0: i32) -> (i32, i32) {
    %c0_i32 = arith.constant 0 : i32
    %c0_i32_0 = arith.constant 0 : i32
    %c0_i32_1 = arith.constant 0 : i32
    return %c0_i32, %c0_i32_0 : i32, i32
  }
  func.func @transform_11(%arg0: i32) -> (i32, i32) {
    %c0_i32 = arith.constant 0 : i32
    %c0_i32_0 = arith.constant 0 : i32
    %c0_i32_1 = arith.constant 0 : i32
    return %c0_i32, %c0_i32_0 : i32, i32
  }
  func.func @transform_12(%arg0: i32) -> (i32, i32) {
    %c0_i32 = arith.constant 0 : i32
    %c0_i32_0 = arith.constant 0 : i32
    return %arg0, %c0_i32 : i32, i32
  }
}

module attributes {stable_mosaic.version = 11 : i64} {
  func.func @out_ffn_kernel(%arg0: i32, %arg1: memref<16x32xf32, #tpu.memory_space<vmem>>, %arg2: memref<16x32xbf16, #tpu.memory_space<vmem>>, %arg3: memref<32x32xbf16, #tpu.memory_space<vmem>>, %arg4: memref<1x32xf32, #tpu.memory_space<vmem>>, %arg5: memref<1x32xf32, #tpu.memory_space<vmem>>, %arg6: memref<1x32xf32, #tpu.memory_space<vmem>>, %arg7: memref<32x64xbf16, #tpu.memory_space<vmem>>, %arg8: memref<1x64xf32, #tpu.memory_space<vmem>>, %arg9: memref<64x32xbf16, #tpu.memory_space<vmem>>, %arg10: memref<1x32xf32, #tpu.memory_space<vmem>>, %arg11: memref<1x32xf32, #tpu.memory_space<vmem>>, %arg12: memref<1x32xf32, #tpu.memory_space<vmem>>, %arg13: memref<16x32xf32, #tpu.memory_space<vmem>>) attributes {dimension_semantics = [#tpu.dimension_semantics<parallel>], iteration_bounds = array<i64: 1>, scalar_prefetch = 0 : i64, scratch_operands = 0 : i64, tpu.core_type = #tpu.core_type<tc>, window_params = [{transform_indices = @transform_0, window_bounds = array<i64: 16, 32>}, {transform_indices = @transform_1, window_bounds = array<i64: 16, 32>}, {pipeline_mode = #tpu.pipeline_mode<synchronous>, transform_indices = @transform_2, window_bounds = array<i64: 32, 32>}, {pipeline_mode = #tpu.pipeline_mode<synchronous>, transform_indices = @transform_3, window_bounds = array<i64: 1, 32>}, {pipeline_mode = #tpu.pipeline_mode<synchronous>, transform_indices = @transform_4, window_bounds = array<i64: 1, 32>}, {pipeline_mode = #tpu.pipeline_mode<synchronous>, transform_indices = @transform_5, window_bounds = array<i64: 1, 32>}, {pipeline_mode = #tpu.pipeline_mode<synchronous>, transform_indices = @transform_6, window_bounds = array<i64: 32, 64>}, {pipeline_mode = #tpu.pipeline_mode<synchronous>, transform_indices = @transform_7, window_bounds = array<i64: 1, 64>}, {pipeline_mode = #tpu.pipeline_mode<synchronous>, transform_indices = @transform_8, window_bounds = array<i64: 64, 32>}, {pipeline_mode = #tpu.pipeline_mode<synchronous>, transform_indices = @transform_9, window_bounds = array<i64: 1, 32>}, {pipeline_mode = #tpu.pipeline_mode<synchronous>, transform_indices = @transform_10, window_bounds = array<i64: 1, 32>}, {pipeline_mode = #tpu.pipeline_mode<synchronous>, transform_indices = @transform_11, window_bounds = array<i64: 1, 32>}, {transform_indices = @transform_12, window_bounds = array<i64: 16, 32>}]} {
    %c0 = arith.constant 0 : index
    %c0_0 = arith.constant 0 : index
    %0 = vector.load %arg1[%c0, %c0_0] : memref<16x32xf32, #tpu.memory_space<vmem>>, vector<16x32xf32>
    %c0_1 = arith.constant 0 : index
    %c0_2 = arith.constant 0 : index
    %1 = vector.load %arg2[%c0_1, %c0_2] : memref<16x32xbf16, #tpu.memory_space<vmem>>, vector<16x32xbf16>
    %c0_3 = arith.constant 0 : index
    %c0_4 = arith.constant 0 : index
    %2 = vector.load %arg3[%c0_3, %c0_4] : memref<32x32xbf16, #tpu.memory_space<vmem>>, vector<32x32xbf16>
    %cst = arith.constant dense<0.000000e+00> : vector<16x32xf32>
    %3 = tpu.matmul %1, %2, %cst {dimension_numbers = #tpu.dot_dimension_numbers<[1], [0], [0], [1], [0, 0, 1, 1], [], []>} : vector<16x32xbf16>, vector<32x32xbf16>, vector<16x32xf32> -> vector<16x32xf32>
    %c0_5 = arith.constant 0 : index
    %c0_6 = arith.constant 0 : index
    %4 = vector.load %arg4[%c0_5, %c0_6] : memref<1x32xf32, #tpu.memory_space<vmem>>, vector<1x32xf32>
    %5 = vector.broadcast %4 : vector<1x32xf32> to vector<16x32xf32>
    %6 = arith.addf %3, %5 : vector<16x32xf32>
    %7 = arith.addf %6, %0 : vector<16x32xf32>
    %c0_7 = arith.constant 0 : index
    %c0_8 = arith.constant 0 : index
    %8 = vector.load %arg5[%c0_7, %c0_8] : memref<1x32xf32, #tpu.memory_space<vmem>>, vector<1x32xf32>
    %c0_9 = arith.constant 0 : index
    %c0_10 = arith.constant 0 : index
    %9 = vector.load %arg6[%c0_9, %c0_10] : memref<1x32xf32, #tpu.memory_space<vmem>>, vector<1x32xf32>
    %cst_11 = arith.constant dense<0.000000e+00> : vector<16xf32>
    %10 = vector.multi_reduction <add>, %7, %cst_11 [1] : vector<16x32xf32> to vector<16xf32>
    %11 = vector.shape_cast %10 : vector<16xf32> to vector<16x1xf32>
    %cst_12 = arith.constant 3.200000e+01 : f32
    %12 = vector.broadcast %cst_12 : f32 to vector<16x1xf32>
    %13 = arith.divf %11, %12 : vector<16x1xf32>
    %14 = vector.broadcast %13 : vector<16x1xf32> to vector<16x32xf32>
    %15 = arith.subf %7, %14 : vector<16x32xf32>
    %16 = arith.mulf %15, %15 : vector<16x32xf32>
    %cst_13 = arith.constant dense<0.000000e+00> : vector<16xf32>
    %17 = vector.multi_reduction <add>, %16, %cst_13 [1] : vector<16x32xf32> to vector<16xf32>
    %18 = vector.shape_cast %17 : vector<16xf32> to vector<16x1xf32>
    %cst_14 = arith.constant 3.200000e+01 : f32
    %19 = vector.broadcast %cst_14 : f32 to vector<16x1xf32>
    %20 = arith.divf %18, %19 : vector<16x1xf32>
    %21 = vector.broadcast %13 : vector<16x1xf32> to vector<16x32xf32>
    %22 = arith.subf %7, %21 : vector<16x32xf32>
    %cst_15 = arith.constant 9.99999996E-13 : f32
    %23 = vector.broadcast %cst_15 : f32 to vector<16x1xf32>
    %24 = arith.addf %20, %23 : vector<16x1xf32>
    %25 = math.rsqrt %24 : vector<16x1xf32>
    %26 = vector.broadcast %25 : vector<16x1xf32> to vector<16x32xf32>
    %27 = arith.mulf %22, %26 : vector<16x32xf32>
    %28 = vector.broadcast %8 : vector<1x32xf32> to vector<16x32xf32>
    %29 = arith.mulf %27, %28 : vector<16x32xf32>
    %30 = vector.broadcast %9 : vector<1x32xf32> to vector<16x32xf32>
    %31 = arith.addf %29, %30 : vector<16x32xf32>
    %32 = arith.truncf %31 : vector<16x32xf32> to vector<16x32xbf16>
    %c0_16 = arith.constant 0 : index
    %c0_17 = arith.constant 0 : index
    %33 = vector.load %arg7[%c0_16, %c0_17] : memref<32x64xbf16, #tpu.memory_space<vmem>>, vector<32x64xbf16>
    %cst_18 = arith.constant dense<0.000000e+00> : vector<16x64xf32>
    %34 = tpu.matmul %32, %33, %cst_18 {dimension_numbers = #tpu.dot_dimension_numbers<[1], [0], [0], [1], [0, 0, 1, 1], [], []>} : vector<16x32xbf16>, vector<32x64xbf16>, vector<16x64xf32> -> vector<16x64xf32>
    %c0_19 = arith.constant 0 : index
    %c0_20 = arith.constant 0 : index
    %35 = vector.load %arg8[%c0_19, %c0_20] : memref<1x64xf32, #tpu.memory_space<vmem>>, vector<1x64xf32>
    %36 = vector.broadcast %35 : vector<1x64xf32> to vector<16x64xf32>
    %37 = arith.addf %34, %36 : vector<16x64xf32>
    %cst_21 = arith.constant 5.000000e-01 : f32
    %38 = vector.broadcast %cst_21 : f32 to vector<16x64xf32>
    %39 = arith.mulf %37, %38 : vector<16x64xf32>
    %cst_22 = arith.constant 0.707106769 : f32
    %40 = vector.broadcast %cst_22 : f32 to vector<16x64xf32>
    %41 = arith.mulf %37, %40 : vector<16x64xf32>
    %42 = math.erf %41 : vector<16x64xf32>
    %cst_23 = arith.constant 1.000000e+00 : f32
    %43 = vector.broadcast %cst_23 : f32 to vector<16x64xf32>
    %44 = arith.addf %43, %42 : vector<16x64xf32>
    %45 = arith.mulf %39, %44 : vector<16x64xf32>
    %46 = arith.truncf %45 : vector<16x64xf32> to vector<16x64xbf16>
    %c0_24 = arith.constant 0 : index
    %c0_25 = arith.constant 0 : index
    %47 = vector.load %arg9[%c0_24, %c0_25] : memref<64x32xbf16, #tpu.memory_space<vmem>>, vector<64x32xbf16>
    %cst_26 = arith.constant dense<0.000000e+00> : vector<16x32xf32>
    %48 = tpu.matmul %46, %47, %cst_26 {dimension_numbers = #tpu.dot_dimension_numbers<[1], [0], [0], [1], [0, 0, 1, 1], [], []>} : vector<16x64xbf16>, vector<64x32xbf16>, vector<16x32xf32> -> vector<16x32xf32>
    %c0_27 = arith.constant 0 : index
    %c0_28 = arith.constant 0 : index
    %49 = vector.load %arg10[%c0_27, %c0_28] : memref<1x32xf32, #tpu.memory_space<vmem>>, vector<1x32xf32>
    %50 = vector.broadcast %49 : vector<1x32xf32> to vector<16x32xf32>
    %51 = arith.addf %48, %50 : vector<16x32xf32>
    %52 = arith.addf %51, %31 : vector<16x32xf32>
    %c0_29 = arith.constant 0 : index
    %c0_30 = arith.constant 0 : index
    %53 = vector.load %arg11[%c0_29, %c0_30] : memref<1x32xf32, #tpu.memory_space<vmem>>, vector<1x32xf32>
    %c0_31 = arith.constant 0 : index
    %c0_32 = arith.constant 0 : index
    %54 = vector.load %arg12[%c0_31, %c0_32] : memref<1x32xf32, #tpu.memory_space<vmem>>, vector<1x32xf32>
    %cst_33 = arith.constant dense<0.000000e+00> : vector<16xf32>
    %55 = vector.multi_reduction <add>, %52, %cst_33 [1] : vector<16x32xf32> to vector<16xf32>
    %56 = vector.shape_cast %55 : vector<16xf32> to vector<16x1xf32>
    %cst_34 = arith.constant 3.200000e+01 : f32
    %57 = vector.broadcast %cst_34 : f32 to vector<16x1xf32>
    %58 = arith.divf %56, %57 : vector<16x1xf32>
    %59 = vector.broadcast %58 : vector<16x1xf32> to vector<16x32xf32>
    %60 = arith.subf %52, %59 : vector<16x32xf32>
    %61 = arith.mulf %60, %60 : vector<16x32xf32>
    %cst_35 = arith.constant dense<0.000000e+00> : vector<16xf32>
    %62 = vector.multi_reduction <add>, %61, %cst_35 [1] : vector<16x32xf32> to vector<16xf32>
    %63 = vector.shape_cast %62 : vector<16xf32> to vector<16x1xf32>
    %cst_36 = arith.constant 3.200000e+01 : f32
    %64 = vector.broadcast %cst_36 : f32 to vector<16x1xf32>
    %65 = arith.divf %63, %64 : vector<16x1xf32>
    %66 = vector.broadcast %58 : vector<16x1xf32> to vector<16x32xf32>
    %67 = arith.subf %52, %66 : vector<16x32xf32>
    %cst_37 = arith.constant 9.99999996E-13 : f32
    %68 = vector.broadcast %cst_37 : f32 to vector<16x1xf32>
    %69 = arith.addf %65, %68 : vector<16x1xf32>
    %70 = math.rsqrt %69 : vector<16x1xf32>
    %71 = vector.broadcast %70 : vector<16x1xf32> to vector<16x32xf32>
    %72 = arith.mulf %67, %71 : vector<16x32xf32>
    %73 = vector.broadcast %53 : vector<1x32xf32> to vector<16x32xf32>
    %74 = arith.mulf %72, %73 : vector<16x32xf32>
    %75 = vector.broadcast %54 : vector<1x32xf32> to vector<16x32xf32>
    %76 = arith.addf %74, %75 : vector<16x32xf32>
    %c0_38 = arith.constant 0 : index
    %c0_39 = arith.constant 0 : index
    %77 = vector.load %arg13[%c0_38, %c0_39] : memref<16x32xf32, #tpu.memory_space<vmem>>, vector<16x32xf32>
    tpu.vector_store %arg13[%c0_38, %c0_39], %76 {strides = array<i32>} : memref<16x32xf32, #tpu.memory_space<vmem>>, vector<16x32xf32>,
    return
  }
  func.func @transform_0(%arg0: i32) -> (i32, i32) {
    %c0_i32 = arith.constant 0 : i32
    %c0_i32_0 = arith.constant 0 : i32
    return %arg0, %c0_i32 : i32, i32
  }
  func.func @transform_1(%arg0: i32) -> (i32, i32) {
    %c0_i32 = arith.constant 0 : i32
    %c0_i32_0 = arith.constant 0 : i32
    return %arg0, %c0_i32 : i32, i32
  }
  func.func @transform_2(%arg0: i32) -> (i32, i32) {
    %c0_i32 = arith.constant 0 : i32
    %c0_i32_0 = arith.constant 0 : i32
    %c0_i32_1 = arith.constant 0 : i32
    return %c0_i32, %c0_i32_0 : i32, i32
  }
  func.func @transform_3(%arg0: i32) -> (i32, i32) {
    %c0_i32 = arith.constant 0 : i32
    %c0_i32_0 = arith.constant 0 : i32
    %c0_i32_1 = arith.constant 0 : i32
    return %c0_i32, %c0_i32_0 : i32, i32
  }
  func.func @transform_4(%arg0: i32) -> (i32, i32) {
    %c0_i32 = arith.constant 0 : i32
    %c0_i32_0 = arith.constant 0 : i32
    %c0_i32_1 = arith.constant 0 : i32
    return %c0_i32, %c0_i32_0 : i32, i32
  }
  func.func @transform_5(%arg0: i32) -> (i32, i32) {
    %c0_i32 = arith.constant 0 : i32
    %c0_i32_0 = arith.constant 0 : i32
    %c0_i32_1 = arith.constant 0 : i32
    return %c0_i32, %c0_i32_0 : i32, i32
  }
  func.func @transform_6(%arg0: i32) -> (i32, i32) {
    %c0_i32 = arith.constant 0 : i32
    %c0_i32_0 = arith.constant 0 : i32
    %c0_i32_1 = arith.constant 0 : i32
    return %c0_i32, %c0_i32_0 : i32, i32
  }
  func.func @transform_7(%arg0: i32) -> (i32, i32) {
    %c0_i32 = arith.constant 0 : i32
    %c0_i32_0 = arith.constant 0 : i32
    %c0_i32_1 = arith.constant 0 : i32
    return %c0_i32, %c0_i32_0 : i32, i32
  }
  func.func @transform_8(%arg0: i32) -> (i32, i32) {
    %c0_i32 = arith.constant 0 : i32
    %c0_i32_0 = arith.constant 0 : i32
    %c0_i32_1 = arith.constant 0 : i32
    return %c0_i32, %c0_i32_0 : i32, i32
  }
  func.func @transform_9(%arg0: i32) -> (i32, i32) {
    %c0_i32 = arith.constant 0 : i32
    %c0_i32_0 = arith.constant 0 : i32
    %c0_i32_1 = arith.constant 0 : i32
    return %c0_i32, %c0_i32_0 : i32, i32
  }
  func.func @transform_10(%arg0: i32) -> (i32, i32) {
    %c0_i32 = arith.constant 0 : i32
    %c0_i32_0 = arith.constant 0 : i32
    %c0_i32_1 = arith.constant 0 : i32
    return %c0_i32, %c0_i32_0 : i32, i32
  }
  func.func @transform_11(%arg0: i32) -> (i32, i32) {
    %c0_i32 = arith.constant 0 : i32
    %c0_i32_0 = arith.constant 0 : i32
    %c0_i32_1 = arith.constant 0 : i32
    return %c0_i32, %c0_i32_0 : i32, i32
  }
  func.func @transform_12(%arg0: i32) -> (i32, i32) {
    %c0_i32 = arith.constant 0 : i32
    %c0_i32_0 = arith.constant 0 : i32
    return %arg0, %c0_i32 : i32, i32
  }
}

</mosaic_0001>

<llo_original>
// kernel: uniter_encoder_forward.7
$region0: #{uniter_encoder_forward.7}
  #allocation0 [shape = 'u32[]', space=smem, size = 0x4, offset = 0x4, fixed_abs, tag = 'smem constant byte address 0x4 - core index']
  #allocation1 [shape = 'u32[144,128]{1,0:T(1,128)}', space=vmem, size = 0x12000, scoped, tag = 'internal scratch']
  %s0 = inlined_call_operand.vmem [shape: bf16[2,4,8,8], index: 0, kind: input, shape index: {}]
  %s1 = inlined_call_operand.vmem [shape: bf16[2,4,8,8], index: 1, kind: input, shape index: {}]
  %s2 = inlined_call_operand.vmem [shape: bf16[2,4,8,8], index: 2, kind: input, shape index: {}]
  %s3 = inlined_call_operand.vmem [shape: f32[2,1,8], index: 3, kind: input, shape index: {}]
  %s4 = inlined_call_operand.vmem [shape: bf16[2,4,8,8], index: 4, kind: output, shape index: {}]
  %s5 = sld [smem:[#allocation0]]
  $region49: #{uniter_encoder_forward.7} parent=0
    _
  %s7 = ssub.s32 1, %s5
  %s8 = scalar_select 0, %s7, %s5
  loop: start=0, step=1, limit=4
  $region2: #{uniter_encoder_forward.7} parent=0 // loop_pre_header
    _
  $region3: #{uniter_encoder_forward.7} parent=0 // loop_header
    %s10 = sphi 0, %s14
    %p11 = scmp.ge.s32.totalorder %s10, 4
    %s17 = sphi 0, %s29
    %s18 = sphi 0, %s25
    %s19 = sphi 0, %s17
    %s20 = sphi 0, %s18
    %s21 = sphi 0, %s19
    %s22 = sphi 0, %s20
    %s34 = sphi 0, %s36
    %s37 = sphi 0, %s34
    %s38 = sphi 0, %s37
    %s54 = sphi 0, %s38
    %s62 = sphi 0, %s64
    %s65 = sphi 0, %s62
    %s66 = sphi 0, %s65
    %s82 = sphi 0, %s66
    %s90 = sphi 0, %s92
    %s93 = sphi 0, %s90
    %s94 = sphi 0, %s93
    %s110 = sphi 0, %s94
    %s116 = sphi 0, %s118
    %s119 = sphi 0, %s116
    %s120 = sphi 0, %s119
    %s136 = sphi 0, %s120
    %s144 = sphi 0, %s146
    %s147 = sphi 0, %s144
    %s148 = sphi 0, %s147
    %s164 = sphi 0, %s148
  $region4: #{uniter_encoder_forward.7} parent=0 // loop_header_branch
    %13 = sbr.rel (%p11) target = $region8
  $region5: #{uniter_encoder_forward.7} parent=0 // loop_body
    %s15 = ssub.s32 %s10, 1
    %s16 = ssub.s32 %s10, 2
    %s23 = sadd.s32 1, %s18
    %p24 = scmp.ge.s32.totalorder %s23, 1
    %s25 = scalar_select %p24, 0, %s23
    %s26 = sadd.s32 1, %s17
    %s27 = scalar_select %p24, %s26, %s17
    %p28 = scmp.ge.s32.totalorder %s27, 2
    %s29 = scalar_select %p28, 0, %s27
    %s30 = ssub.s32 %s17, %s29
    %s31 = ssub.s32 %s18, %s25
    %s32 = sor.u32 %s30, %s31
    %p33 = scmp.eq.s32.totalorder %s32, 0
    %s35 = sadd.s32 %s34, 1
    %s36 = scalar_select %p33, %s34, %s35
    %p39 = pneg %p33
    %p40 = scmp.eq.s32.totalorder %s10, 1
    %p41 = por %p39, %p40
    %p42 = scmp.ne.s32.totalorder %s34, %s37
    %p43 = scmp.eq.s32.totalorder %s10, 0
    %p44 = por %p42, %p43
    %p45 = scmp.ne.s32.totalorder %s34, %s37
    %p46 = scmp.eq.s32.totalorder %s15, 1
    %p47 = por %p45, %p46
    %p48 = scmp.ne.s32.totalorder %s37, %s38
    %p49 = scmp.eq.s32.totalorder %s15, 0
    %p50 = por %p48, %p49
    %p51 = scmp.ne.s32.totalorder %s37, %s38
    %p52 = scmp.eq.s32.totalorder %s16, 1
    %p53 = por %p51, %p52
    %p55 = scmp.ne.s32.totalorder %s38, %s54
    %p56 = scmp.eq.s32.totalorder %s16, 0
    %p57 = por %p55, %p56
    %s58 = ssub.s32 %s17, %s29
    %s59 = ssub.s32 %s18, %s25
    %s60 = sor.u32 %s58, %s59
    %p61 = scmp.eq.s32.totalorder %s60, 0
    %s63 = sadd.s32 %s62, 1
    %s64 = scalar_select %p61, %s62, %s63
    %p67 = pneg %p61
    %p68 = scmp.eq.s32.totalorder %s10, 1
    %p69 = por %p67, %p68
    %p70 = scmp.ne.s32.totalorder %s62, %s65
    %p71 = scmp.eq.s32.totalorder %s10, 0
    %p72 = por %p70, %p71
    %p73 = scmp.ne.s32.totalorder %s62, %s65
    %p74 = scmp.eq.s32.totalorder %s15, 1
    %p75 = por %p73, %p74
    %p76 = scmp.ne.s32.totalorder %s65, %s66
    %p77 = scmp.eq.s32.totalorder %s15, 0
    %p78 = por %p76, %p77
    %p79 = scmp.ne.s32.totalorder %s65, %s66
    %p80 = scmp.eq.s32.totalorder %s16, 1
    %p81 = por %p79, %p80
    %p83 = scmp.ne.s32.totalorder %s66, %s82
    %p84 = scmp.eq.s32.totalorder %s16, 0
    %p85 = por %p83, %p84
    %s86 = ssub.s32 %s17, %s29
    %s87 = ssub.s32 %s18, %s25
    %s88 = sor.u32 %s86, %s87
    %p89 = scmp.eq.s32.totalorder %s88, 0
    %s91 = sadd.s32 %s90, 1
    %s92 = scalar_select %p89, %s90, %s91
    %p95 = pneg %p89
    %p96 = scmp.eq.s32.totalorder %s10, 1
    %p97 = por %p95, %p96
    %p98 = scmp.ne.s32.totalorder %s90, %s93
    %p99 = scmp.eq.s32.totalorder %s10, 0
    %p100 = por %p98, %p99
    %p101 = scmp.ne.s32.totalorder %s90, %s93
    %p102 = scmp.eq.s32.totalorder %s15, 1
    %p103 = por %p101, %p102
    %p104 = scmp.ne.s32.totalorder %s93, %s94
    %p105 = scmp.eq.s32.totalorder %s15, 0
    %p106 = por %p104, %p105
    %p107 = scmp.ne.s32.totalorder %s93, %s94
    %p108 = scmp.eq.s32.totalorder %s16, 1
    %p109 = por %p107, %p108
    %p111 = scmp.ne.s32.totalorder %s94, %s110
    %p112 = scmp.eq.s32.totalorder %s16, 0
    %p113 = por %p111, %p112
    %s114 = ssub.s32 %s17, %s29
    %p115 = scmp.eq.s32.totalorder %s114, 0
    %s117 = sadd.s32 %s116, 1
    %s118 = scalar_select %p115, %s116, %s117
    %p121 = pneg %p115
    %p122 = scmp.eq.s32.totalorder %s10, 1
    %p123 = por %p121, %p122
    %p124 = scmp.ne.s32.totalorder %s116, %s119
    %p125 = scmp.eq.s32.totalorder %s10, 0
    %p126 = por %p124, %p125
    %p127 = scmp.ne.s32.totalorder %s116, %s119
    %p128 = scmp.eq.s32.totalorder %s15, 1
    %p129 = por %p127, %p128
    %p130 = scmp.ne.s32.totalorder %s119, %s120
    %p131 = scmp.eq.s32.totalorder %s15, 0
    %p132 = por %p130, %p131
    %p133 = scmp.ne.s32.totalorder %s119, %s120
    %p134 = scmp.eq.s32.totalorder %s16, 1
    %p135 = por %p133, %p134
    %p137 = scmp.ne.s32.totalorder %s120, %s136
    %p138 = scmp.eq.s32.totalorder %s16, 0
    %p139 = por %p137, %p138
    %s140 = ssub.s32 %s17, %s29
    %s141 = ssub.s32 %s18, %s25
    %s142 = sor.u32 %s140, %s141
    %p143 = scmp.eq.s32.totalorder %s142, 0
    %s145 = sadd.s32 %s144, 1
    %s146 = scalar_select %p143, %s144, %s145
    %p149 = pneg %p143
    %p150 = scmp.eq.s32.totalorder %s10, 1
    %p151 = por %p149, %p150
    %p152 = scmp.ne.s32.totalorder %s144, %s147
    %p153 = scmp.eq.s32.totalorder %s10, 0
    %p154 = por %p152, %p153
    %p155 = scmp.ne.s32.totalorder %s144, %s147
    %p156 = scmp.eq.s32.totalorder %s15, 1
    %p157 = por %p155, %p156
    %p158 = scmp.ne.s32.totalorder %s147, %s148
    %p159 = scmp.eq.s32.totalorder %s15, 0
    %p160 = por %p158, %p159
    %p161 = scmp.ne.s32.totalorder %s147, %s148
    %p162 = scmp.eq.s32.totalorder %s16, 1
    %p163 = por %p161, %p162
    %p165 = scmp.ne.s32.totalorder %s148, %s164
    %p166 = scmp.eq.s32.totalorder %s16, 0
    %p167 = por %p165, %p166
    %p168 = scmp.le.s32.totalorder 1, %s10
    %p169 = scmp.lt.s32.totalorder %s10, 3
    %p170 = pnand %p168, %p169
    %p171 = pneg %p170
    // Predicated region
    $region9: #{uniter_encoder_forward.7} parent=5 // pred_check
      _
    $region10: #{uniter_encoder_forward.7} parent=5 // pred_check_branch
      %173 = sbr.rel (%p170) target = $region12
    $region11: #{uniter_encoder_forward.7} parent=5 // pred_region
      %s174 = ssub.s32 %s10, 1
    $region12: #{uniter_encoder_forward.7} parent=5 // pred_fallthru
      _
    %p175 = scmp.lt.s32.totalorder %s10, 2
    // Predicated region
    $region13: #{uniter_encoder_forward.7} parent=5 // pred_check
      %p176 = pneg %p175
    $region14: #{uniter_encoder_forward.7} parent=5 // pred_check_branch
      %178 = sbr.rel (%p176) target = $region16
    $region15: #{uniter_encoder_forward.7} parent=5 // pred_region
      // Predicated region
      $region17: #{uniter_encoder_forward.7} parent=15 // pred_check
        %p179 = pneg %p44
      $region18: #{uniter_encoder_forward.7} parent=15 // pred_check_branch
        %181 = sbr.rel (%p179) target = $region20
      $region19: #{uniter_encoder_forward.7} parent=15 // pred_region
        %s182 = smul.u32 4, %s18
        %p183 = scmp.lt.s32.totalorder %s17, 1
        %s184 = scalar_select %p183, %s17, 1
        %p185 = scmp.lt.s32.totalorder %s182, 3
        %s186 = scalar_select %p185, %s182, 3
        %s187 = smul.addr %s184, 4
        %s188 = sadd.s32 %s186, %s187
        %s189 = smul.addr %s188, 4
        %s190 = scalar_lea.vmem %s0, %s189
        %s191 = smul.u32 4, %s18
      $region20: #{uniter_encoder_forward.7} parent=15 // pred_fallthru
        _
      // Predicated region
      $region21: #{uniter_encoder_forward.7} parent=15 // pred_check
        %p192 = pneg %p72
      $region22: #{uniter_encoder_forward.7} parent=15 // pred_check_branch
        %194 = sbr.rel (%p192) target = $region24
      $region23: #{uniter_encoder_forward.7} parent=15 // pred_region
        %s195 = smul.u32 4, %s18
        %p196 = scmp.lt.s32.totalorder %s17, 1
        %s197 = scalar_select %p196, %s17, 1
        %p198 = scmp.lt.s32.totalorder %s195, 3
        %s199 = scalar_select %p198, %s195, 3
        %s200 = smul.addr %s197, 4
        %s201 = sadd.s32 %s199, %s200
        %s202 = smul.addr %s201, 4
        %s203 = scalar_lea.vmem %s1, %s202
        %s204 = smul.u32 4, %s18
      $region24: #{uniter_encoder_forward.7} parent=15 // pred_fallthru
        _
      // Predicated region
      $region25: #{uniter_encoder_forward.7} parent=15 // pred_check
        %p205 = pneg %p100
      $region26: #{uniter_encoder_forward.7} parent=15 // pred_check_branch
        %207 = sbr.rel (%p205) target = $region28
      $region27: #{uniter_encoder_forward.7} parent=15 // pred_region
        %s208 = smul.u32 4, %s18
        %p209 = scmp.lt.s32.totalorder %s17, 1
        %s210 = scalar_select %p209, %s17, 1
        %p211 = scmp.lt.s32.totalorder %s208, 3
        %s212 = scalar_select %p211, %s208, 3
        %s213 = smul.addr %s210, 4
        %s214 = sadd.s32 %s212, %s213
        %s215 = smul.addr %s214, 4
        %s216 = scalar_lea.vmem %s2, %s215
        %s217 = smul.u32 4, %s18
      $region28: #{uniter_encoder_forward.7} parent=15 // pred_fallthru
        _
      // Predicated region
      $region29: #{uniter_encoder_forward.7} parent=15 // pred_check
        %p218 = pneg %p126
      $region30: #{uniter_encoder_forward.7} parent=15 // pred_check_branch
        %220 = sbr.rel (%p218) target = $region32
      $region31: #{uniter_encoder_forward.7} parent=15 // pred_region
        %p221 = scmp.lt.s32.totalorder %s17, 1
        %s222 = scalar_select %p221, %s17, 1
        %s223 = scalar_lea.vmem %s3, %s222
      $region32: #{uniter_encoder_forward.7} parent=15 // pred_fallthru
        _
    $region16: #{uniter_encoder_forward.7} parent=5 // pred_fallthru
      _
    %p224 = scmp.le.s32.totalorder 1, %s10
    %p225 = scmp.lt.s32.totalorder %s10, 3
    %p226 = pnand %p224, %p225
    %p227 = pneg %p226
    // Predicated region
    $region33: #{uniter_encoder_forward.7} parent=5 // pred_check
      _
    $region34: #{uniter_encoder_forward.7} parent=5 // pred_check_branch
      %229 = sbr.rel (%p226) target = $region36
    $region35: #{uniter_encoder_forward.7} parent=5 // pred_region
      %s230 = ssub.s32 %s10, 1
      %s231 = smul.u32 4, %s20
      %p232 = scmp.lt.s32.totalorder %s19, 1
      %s233 = scalar_select %p232, %s19, 1
      %p234 = scmp.lt.s32.totalorder %s231, 3
      %s235 = scalar_select %p234, %s231, 3
      %s236 = smul.addr %s233, 4
      %s237 = sadd.s32 %s235, %s236
      %s238 = smul.addr %s237, 4
      %s239 = scalar_lea.vmem %s0, %s238
      %p240 = pneg %p50
      %p241 = pneg %p47
      %s242 = smul.u32 4, %s20
      %p243 = scmp.lt.s32.totalorder %s19, 1
      %s244 = scalar_select %p243, %s19, 1
      %p245 = scmp.lt.s32.totalorder %s242, 3
      %s246 = scalar_select %p245, %s242, 3
      %s247 = smul.addr %s244, 4
      %s248 = sadd.s32 %s246, %s247
      %s249 = smul.addr %s248, 4
      %s250 = scalar_lea.vmem %s1, %s249
      %p251 = pneg %p78
      %p252 = pneg %p75
      %s253 = smul.u32 4, %s20
      %p254 = scmp.lt.s32.totalorder %s19, 1
      %s255 = scalar_select %p254, %s19, 1
      %p256 = scmp.lt.s32.totalorder %s253, 3
      %s257 = scalar_select %p256, %s253, 3
      %s258 = smul.addr %s255, 4
      %s259 = sadd.s32 %s257, %s258
      %s260 = smul.addr %s259, 4
      %s261 = scalar_lea.vmem %s2, %s260
      %p262 = pneg %p106
      %p263 = pneg %p103
      %p264 = scmp.lt.s32.totalorder %s19, 1
      %s265 = scalar_select %p264, %s19, 1
      %s266 = scalar_lea.vmem %s3, %s265
      %p267 = pneg %p132
      %p268 = pneg %p129
      %p269 = pneg %p160
      %p270 = pneg %p157
      %s271 = smul.u32 4, %s20
      %p272 = scmp.lt.s32.totalorder %s19, 1
      %s273 = scalar_select %p272, %s19, 1
      %p274 = scmp.lt.s32.totalorder %s271, 3
      %s275 = scalar_select %p274, %s271, 3
      %s276 = smul.addr %s273, 4
      %s277 = sadd.s32 %s275, %s276
      %s278 = smul.addr %s277, 4
      %s279 = scalar_lea.vmem %s4, %s278
      %s280 = smul.u32 4, %s20
      %p281 = scmp.lt.s32.totalorder %s19, 1
      %s282 = scalar_select %p281, %s19, 1
      %p283 = scmp.lt.s32.totalorder %s280, 3
      %s284 = scalar_select %p283, %s280, 3
      %s285 = smul.addr %s282, 4
      %s286 = sadd.s32 %s284, %s285
      %s287 = smul.addr %s286, 4
      %s288 = scalar_lea.vmem %s0, %s287
      %s289 = smul.u32 4, %s20
      %s290 = smul.u32 4, %s20
      %p291 = scmp.lt.s32.totalorder %s19, 1
      %s292 = scalar_select %p291, %s19, 1
      %p293 = scmp.lt.s32.totalorder %s290, 3
      %s294 = scalar_select %p293, %s290, 3
      %s295 = smul.addr %s292, 4
      %s296 = sadd.s32 %s294, %s295
      %s297 = smul.addr %s296, 4
      %s298 = scalar_lea.vmem %s1, %s297
      %s299 = smul.u32 4, %s20
      %s300 = smul.u32 4, %s20
      %p301 = scmp.lt.s32.totalorder %s19, 1
      %s302 = scalar_select %p301, %s19, 1
      %p303 = scmp.lt.s32.totalorder %s300, 3
      %s304 = scalar_select %p303, %s300, 3
      %s305 = smul.addr %s302, 4
      %s306 = sadd.s32 %s304, %s305
      %s307 = smul.addr %s306, 4
      %s308 = scalar_lea.vmem %s2, %s307
      %s309 = smul.u32 4, %s20
      %p310 = scmp.lt.s32.totalorder %s19, 1
      %s311 = scalar_select %p310, %s19, 1
      %s312 = scalar_lea.vmem %s3, %s311
      %s313 = smul.u32 4, %s20
      %p314 = scmp.lt.s32.totalorder %s19, 1
      %s315 = scalar_select %p314, %s19, 1
      %p316 = scmp.lt.s32.totalorder %s313, 3
      %s317 = scalar_select %p316, %s313, 3
      %s318 = smul.addr %s315, 4
      %s319 = sadd.s32 %s317, %s318
      %s320 = smul.addr %s319, 4
      %s321 = scalar_lea.vmem %s4, %s320
      %s322 = smul.u32 4, %s20
      %v324 = vld [vmem:[%s288] sm:$0xf]
      %v325 = vld [vmem:[%s288 + $0x4] sm:$0xf]
      %v326 = vld [vmem:[%s288 + $0x8] sm:$0xf]
      %v327 = vld [vmem:[%s288 + $0xc] sm:$0xf]
      %v328 = vld [vmem:[%s298] sm:$0xf]
      %v329 = vld [vmem:[%s298 + $0x4] sm:$0xf]
      %v330 = vld [vmem:[%s298 + $0x8] sm:$0xf]
      %v331 = vld [vmem:[%s298 + $0xc] sm:$0xf]
      %v332 = vld [vmem:[%s308] sm:$0xf]
      %v333 = vld [vmem:[%s308 + $0x4] sm:$0xf]
      %v334 = vld [vmem:[%s308 + $0x8] sm:$0xf]
      %v335 = vld [vmem:[%s308 + $0xc] sm:$0xf]
      %vm336 = vcmask 64512
      %v338 = vsel %vm336, %v324, 0
      %v341 = vsel %vm336, %v328, 0
      %343 = vmatprep.subr.bf16.mxu0 0
      %344 = vmatpush1.bf16.xpose.msra.mxu0 %v341
      %345 = vmatprep.subr.bf16.mxu0 0
      %346 = vmatpush1.bf16.xpose.msra.mxu0 0
      %347 = vmatprep.subr.bf16.mxu0 0
      %348 = vmatpush1.bf16.xpose.msra.mxu0 0
      %349 = vmatprep.subr.bf16.mxu0 0
      %350 = vmatpush1.bf16.xpose.msra.mxu0 0
      %351 = vmatprep.subr.bf16.mxu0 0
      %352 = vmatpush1.bf16.xpose.msra.mxu0 0
      %353 = vmatprep.subr.bf16.mxu0 0
      %354 = vmatpush1.bf16.xpose.msra.mxu0 0
      %355 = vmatprep.subr.bf16.mxu0 0
      %356 = vmatpush1.bf16.xpose.msra.mxu0 0
      %357 = vmatprep.subr.bf16.mxu0 0
      %358 = vmatpush1.bf16.xpose.msra.mxu0 0
      %359 = vmatprep.subr.bf16.mxu0 0
      %360 = vmatpush1.bf16.xpose.msra.mxu0 0
      %361 = vmatprep.subr.bf16.mxu0 0
      %362 = vmatpush1.bf16.xpose.msra.mxu0 0
      %363 = vmatprep.subr.bf16.mxu0 0
      %364 = vmatpush1.bf16.xpose.msra.mxu0 0
      %365 = vmatprep.subr.bf16.mxu0 0
      %366 = vmatpush1.bf16.xpose.msra.mxu0 0
      %367 = vmatprep.subr.bf16.mxu0 0
      %368 = vmatpush1.bf16.xpose.msra.mxu0 0
      %369 = vmatprep.subr.bf16.mxu0 0
      %370 = vmatpush1.bf16.xpose.msra.mxu0 0
      %371 = vmatprep.subr.bf16.mxu0 0
      %372 = vmatpush1.bf16.xpose.msra.mxu0 0
      %373 = vmatprep.subr.bf16.mxu0 0
      %374 = vmatpush1.bf16.xpose.msra.mxu0 0
      %375 = vmatprep.mubr.bf16.mxu0 0
      %376 = vmatmul.mubr.bf16.gmra.mrb[0].mxu0 %v338
      %v377 = vpop.f32.mrb[0].mxu0
      %v378 = vadd.f32 0.0, %v377
      %v379 = vpop.f32.mrb[0].mxu0
      %v380 = vpop.f32.mrb[0].mxu0
      %v381 = vpop.f32.mrb[0].mxu0
      %382 = vdwg.mxu0
      %v384 = vsel %vm336, %v325, 0
      %v387 = vsel %vm336, %v329, 0
      %389 = vmatprep.subr.bf16.mxu0 0
      %390 = vmatpush1.bf16.xpose.msra.mxu0 %v387
      %391 = vmatprep.subr.bf16.mxu0 0
      %392 = vmatpush1.bf16.xpose.msra.mxu0 0
      %393 = vmatprep.subr.bf16.mxu0 0
      %394 = vmatpush1.bf16.xpose.msra.mxu0 0
      %395 = vmatprep.subr.bf16.mxu0 0
      %396 = vmatpush1.bf16.xpose.msra.mxu0 0
      %397 = vmatprep.subr.bf16.mxu0 0
      %398 = vmatpush1.bf16.xpose.msra.mxu0 0
      %399 = vmatprep.subr.bf16.mxu0 0
      %400 = vmatpush1.bf16.xpose.msra.mxu0 0
      %401 = vmatprep.subr.bf16.mxu0 0
      %402 = vmatpush1.bf16.xpose.msra.mxu0 0
      %403 = vmatprep.subr.bf16.mxu0 0
      %404 = vmatpush1.bf16.xpose.msra.mxu0 0
      %405 = vmatprep.subr.bf16.mxu0 0
      %406 = vmatpush1.bf16.xpose.msra.mxu0 0
      %407 = vmatprep.subr.bf16.mxu0 0
      %408 = vmatpush1.bf16.xpose.msra.mxu0 0
      %409 = vmatprep.subr.bf16.mxu0 0
      %410 = vmatpush1.bf16.xpose.msra.mxu0 0
      %411 = vmatprep.subr.bf16.mxu0 0
      %412 = vmatpush1.bf16.xpose.msra.mxu0 0
      %413 = vmatprep.subr.bf16.mxu0 0
      %414 = vmatpush1.bf16.xpose.msra.mxu0 0
      %415 = vmatprep.subr.bf16.mxu0 0
      %416 = vmatpush1.bf16.xpose.msra.mxu0 0
      %417 = vmatprep.subr.bf16.mxu0 0
      %418 = vmatpush1.bf16.xpose.msra.mxu0 0
      %419 = vmatprep.subr.bf16.mxu0 0
      %420 = vmatpush1.bf16.xpose.msra.mxu0 0
      %421 = vmatprep.mubr.bf16.mxu0 0
      %422 = vmatmul.mubr.bf16.gmra.mrb[0].mxu0 %v384
      %v423 = vpop.f32.mrb[0].mxu0
      %v424 = vadd.f32 0.0, %v423
      %v425 = vpop.f32.mrb[0].mxu0
      %v426 = vpop.f32.mrb[0].mxu0
      %v427 = vpop.f32.mrb[0].mxu0
      %428 = vdwg.mxu0
      %v430 = vsel %vm336, %v326, 0
      %v433 = vsel %vm336, %v330, 0
      %435 = vmatprep.subr.bf16.mxu0 0
      %436 = vmatpush1.bf16.xpose.msra.mxu0 %v433
      %437 = vmatprep.subr.bf16.mxu0 0
      %438 = vmatpush1.bf16.xpose.msra.mxu0 0
      %439 = vmatprep.subr.bf16.mxu0 0
      %440 = vmatpush1.bf16.xpose.msra.mxu0 0
      %441 = vmatprep.subr.bf16.mxu0 0
      %442 = vmatpush1.bf16.xpose.msra.mxu0 0
      %443 = vmatprep.subr.bf16.mxu0 0
      %444 = vmatpush1.bf16.xpose.msra.mxu0 0
      %445 = vmatprep.subr.bf16.mxu0 0
      %446 = vmatpush1.bf16.xpose.msra.mxu0 0
      %447 = vmatprep.subr.bf16.mxu0 0
      %448 = vmatpush1.bf16.xpose.msra.mxu0 0
      %449 = vmatprep.subr.bf16.mxu0 0
      %450 = vmatpush1.bf16.xpose.msra.mxu0 0
      %451 = vmatprep.subr.bf16.mxu0 0
      %452 = vmatpush1.bf16.xpose.msra.mxu0 0
      %453 = vmatprep.subr.bf16.mxu0 0
      %454 = vmatpush1.bf16.xpose.msra.mxu0 0
      %455 = vmatprep.subr.bf16.mxu0 0
      %456 = vmatpush1.bf16.xpose.msra.mxu0 0
      %457 = vmatprep.subr.bf16.mxu0 0
      %458 = vmatpush1.bf16.xpose.msra.mxu0 0
      %459 = vmatprep.subr.bf16.mxu0 0
      %460 = vmatpush1.bf16.xpose.msra.mxu0 0
      %461 = vmatprep.subr.bf16.mxu0 0
      %462 = vmatpush1.bf16.xpose.msra.mxu0 0
      %463 = vmatprep.subr.bf16.mxu0 0
      %464 = vmatpush1.bf16.xpose.msra.mxu0 0
      %465 = vmatprep.subr.bf16.mxu0 0
      %466 = vmatpush1.bf16.xpose.msra.mxu0 0
      %467 = vmatprep.mubr.bf16.mxu0 0
      %468 = vmatmul.mubr.bf16.gmra.mrb[0].mxu0 %v430
      %v469 = vpop.f32.mrb[0].mxu0
      %v470 = vadd.f32 0.0, %v469
      %v471 = vpop.f32.mrb[0].mxu0
      %v472 = vpop.f32.mrb[0].mxu0
      %v473 = vpop.f32.mrb[0].mxu0
      %474 = vdwg.mxu0
      %v476 = vsel %vm336, %v327, 0
      %v479 = vsel %vm336, %v331, 0
      %481 = vmatprep.subr.bf16.mxu0 0
      %482 = vmatpush1.bf16.xpose.msra.mxu0 %v479
      %483 = vmatprep.subr.bf16.mxu0 0
      %484 = vmatpush1.bf16.xpose.msra.mxu0 0
      %485 = vmatprep.subr.bf16.mxu0 0
      %486 = vmatpush1.bf16.xpose.msra.mxu0 0
      %487 = vmatprep.subr.bf16.mxu0 0
      %488 = vmatpush1.bf16.xpose.msra.mxu0 0
      %489 = vmatprep.subr.bf16.mxu0 0
      %490 = vmatpush1.bf16.xpose.msra.mxu0 0
      %491 = vmatprep.subr.bf16.mxu0 0
      %492 = vmatpush1.bf16.xpose.msra.mxu0 0
      %493 = vmatprep.subr.bf16.mxu0 0
      %494 = vmatpush1.bf16.xpose.msra.mxu0 0
      %495 = vmatprep.subr.bf16.mxu0 0
      %496 = vmatpush1.bf16.xpose.msra.mxu0 0
      %497 = vmatprep.subr.bf16.mxu0 0
      %498 = vmatpush1.bf16.xpose.msra.mxu0 0
      %499 = vmatprep.subr.bf16.mxu0 0
      %500 = vmatpush1.bf16.xpose.msra.mxu0 0
      %501 = vmatprep.subr.bf16.mxu0 0
      %502 = vmatpush1.bf16.xpose.msra.mxu0 0
      %503 = vmatprep.subr.bf16.mxu0 0
      %504 = vmatpush1.bf16.xpose.msra.mxu0 0
      %505 = vmatprep.subr.bf16.mxu0 0
      %506 = vmatpush1.bf16.xpose.msra.mxu0 0
      %507 = vmatprep.subr.bf16.mxu0 0
      %508 = vmatpush1.bf16.xpose.msra.mxu0 0
      %509 = vmatprep.subr.bf16.mxu0 0
      %510 = vmatpush1.bf16.xpose.msra.mxu0 0
      %511 = vmatprep.subr.bf16.mxu0 0
      %512 = vmatpush1.bf16.xpose.msra.mxu0 0
      %513 = vmatprep.mubr.bf16.mxu0 0
      %514 = vmatmul.mubr.bf16.gmra.mrb[0].mxu0 %v476
      %v515 = vpop.f32.mrb[0].mxu0
      %v516 = vadd.f32 0.0, %v515
      %v517 = vpop.f32.mrb[0].mxu0
      %v518 = vpop.f32.mrb[0].mxu0
      %v519 = vpop.f32.mrb[0].mxu0
      %520 = vdwg.mxu0
      %v521 = vmul.f32 %v378, 0.35355338
      %v522 = vmul.f32 %v424, 0.35355338
      %v523 = vmul.f32 %v470, 0.35355338
      %v524 = vmul.f32 %v516, 0.35355338
      %v525 = vld [vmem:[%s312] sm:$0x1]
      %v527 = vlaneseq
      %v528 = vshrl.u32 %v527, 7
      %v529 = vsub.s32 0, %v528
      %v530 = vrot.slane %v525, %v529
      %v532 = vadd.f32 %v521, %v530
      %v533 = vadd.f32 %v522, %v530
      %v534 = vadd.f32 %v523, %v530
      %v535 = vadd.f32 %v524, %v530
      %v536 = vsel %vm336, %v532, -inf
      %537 = vmax.xlane.f32.xlu0 %v536
      %v538 = vpop.xlane.xlu0 %537
      %v539 = vsel %vm336, %v533, -inf
      %540 = vmax.xlane.f32.xlu0 %v539
      %v541 = vpop.xlane.xlu0 %540
      %v542 = vsel %vm336, %v534, -inf
      %543 = vmax.xlane.f32.xlu0 %v542
      %v544 = vpop.xlane.xlu0 %543
      %v545 = vsel %vm336, %v535, -inf
      %546 = vmax.xlane.f32.xlu0 %v545
      %v547 = vpop.xlane.xlu0 %546
      %v548 = vsub.f32 %v532, %v538
      %v549 = vsub.f32 %v533, %v541
      %v550 = vsub.f32 %v534, %v544
      %v551 = vsub.f32 %v535, %v547
      %v552 = vmul.f32 %v548, 1.442695
      %v553 = vpow.pop %v552
      %v554 = vmul.f32 %v549, 1.442695
      %v555 = vpow.pop %v554
      %v556 = vmul.f32 %v550, 1.442695
      %v557 = vpow.pop %v556
      %v558 = vmul.f32 %v551, 1.442695
      %v559 = vpow.pop %v558
      %v560 = vsel %vm336, %v553, 0.0
      %561 = vadd.xlane.f32.xlu0 %v560
      %v562 = vpop.xlane.xlu0 %561
      %v563 = vsel %vm336, %v555, 0.0
      %564 = vadd.xlane.f32.xlu0 %v563
      %v565 = vpop.xlane.xlu0 %564
      %v566 = vsel %vm336, %v557, 0.0
      %567 = vadd.xlane.f32.xlu0 %v566
      %v568 = vpop.xlane.xlu0 %567
      %v569 = vsel %vm336, %v559, 0.0
      %570 = vadd.xlane.f32.xlu0 %v569
      %v571 = vpop.xlane.xlu0 %570
      %v572 = vrcp.pop %v562
      %v573 = vrcp.pop %v565
      %v574 = vrcp.pop %v568
      %v575 = vrcp.pop %v571
      %v576 = vmul.f32 %v553, %v572
      %v577 = vmul.f32 %v555, %v573
      %v578 = vmul.f32 %v557, %v574
      %v579 = vmul.f32 %v559, %v575
      %v580 = vpack.c.bf16 %v576, %v576
      %v581 = vpack.c.bf16 %v577, %v577
      %v582 = vpack.c.bf16 %v578, %v578
      %v583 = vpack.c.bf16 %v579, %v579
      %v585 = vsel %vm336, %v580, 0
      %vm587 = vcmask 1043456
      %v589 = vsel %vm587, %v332, 0
      %591 = vmatprep.subr.bf16.mxu0 0
      %592 = vmatpush1.bf16.msra.mxu0 %v589
      %593 = vmatprep.subr.bf16.mxu0 0
      %594 = vmatpush1.bf16.msra.mxu0 0
      %595 = vmatprep.subr.bf16.mxu0 0
      %596 = vmatpush1.bf16.msra.mxu0 0
      %597 = vmatprep.subr.bf16.mxu0 0
      %598 = vmatpush1.bf16.msra.mxu0 0
      %599 = vmatprep.subr.bf16.mxu0 0
      %600 = vmatpush1.bf16.msra.mxu0 0
      %601 = vmatprep.subr.bf16.mxu0 0
      %602 = vmatpush1.bf16.msra.mxu0 0
      %603 = vmatprep.subr.bf16.mxu0 0
      %604 = vmatpush1.bf16.msra.mxu0 0
      %605 = vmatprep.subr.bf16.mxu0 0
      %606 = vmatpush1.bf16.msra.mxu0 0
      %607 = vmatprep.subr.bf16.mxu0 0
      %608 = vmatpush1.bf16.msra.mxu0 0
      %609 = vmatprep.subr.bf16.mxu0 0
      %610 = vmatpush1.bf16.msra.mxu0 0
      %611 = vmatprep.subr.bf16.mxu0 0
      %612 = vmatpush1.bf16.msra.mxu0 0
      %613 = vmatprep.subr.bf16.mxu0 0
      %614 = vmatpush1.bf16.msra.mxu0 0
      %615 = vmatprep.subr.bf16.mxu0 0
      %616 = vmatpush1.bf16.msra.mxu0 0
      %617 = vmatprep.subr.bf16.mxu0 0
      %618 = vmatpush1.bf16.msra.mxu0 0
      %619 = vmatprep.subr.bf16.mxu0 0
      %620 = vmatpush1.bf16.msra.mxu0 0
      %621 = vmatprep.subr.bf16.mxu0 0
      %622 = vmatpush1.bf16.msra.mxu0 0
      %623 = vmatprep.mubr.bf16.mxu0 0
      %624 = vmatmul.mubr.bf16.gmra.mrb[0].mxu0 %v585
      %v625 = vpop.f32.mrb[0].mxu0
      %v626 = vadd.f32 0.0, %v625
      %v627 = vpop.f32.mrb[0].mxu0
      %v628 = vpop.f32.mrb[0].mxu0
      %v629 = vpop.f32.mrb[0].mxu0
      %630 = vdwg.mxu0
      %v632 = vsel %vm336, %v581, 0
      %v635 = vsel %vm587, %v333, 0
      %637 = vmatprep.subr.bf16.mxu0 0
      %638 = vmatpush1.bf16.msra.mxu0 %v635
      %639 = vmatprep.subr.bf16.mxu0 0
      %640 = vmatpush1.bf16.msra.mxu0 0
      %641 = vmatprep.subr.bf16.mxu0 0
      %642 = vmatpush1.bf16.msra.mxu0 0
      %643 = vmatprep.subr.bf16.mxu0 0
      %644 = vmatpush1.bf16.msra.mxu0 0
      %645 = vmatprep.subr.bf16.mxu0 0
      %646 = vmatpush1.bf16.msra.mxu0 0
      %647 = vmatprep.subr.bf16.mxu0 0
      %648 = vmatpush1.bf16.msra.mxu0 0
      %649 = vmatprep.subr.bf16.mxu0 0
      %650 = vmatpush1.bf16.msra.mxu0 0
      %651 = vmatprep.subr.bf16.mxu0 0
      %652 = vmatpush1.bf16.msra.mxu0 0
      %653 = vmatprep.subr.bf16.mxu0 0
      %654 = vmatpush1.bf16.msra.mxu0 0
      %655 = vmatprep.subr.bf16.mxu0 0
      %656 = vmatpush1.bf16.msra.mxu0 0
      %657 = vmatprep.subr.bf16.mxu0 0
      %658 = vmatpush1.bf16.msra.mxu0 0
      %659 = vmatprep.subr.bf16.mxu0 0
      %660 = vmatpush1.bf16.msra.mxu0 0
      %661 = vmatprep.subr.bf16.mxu0 0
      %662 = vmatpush1.bf16.msra.mxu0 0
      %663 = vmatprep.subr.bf16.mxu0 0
      %664 = vmatpush1.bf16.msra.mxu0 0
      %665 = vmatprep.subr.bf16.mxu0 0
      %666 = vmatpush1.bf16.msra.mxu0 0
      %667 = vmatprep.subr.bf16.mxu0 0
      %668 = vmatpush1.bf16.msra.mxu0 0
      %669 = vmatprep.mubr.bf16.mxu0 0
      %670 = vmatmul.mubr.bf16.gmra.mrb[0].mxu0 %v632
      %v671 = vpop.f32.mrb[0].mxu0
      %v672 = vadd.f32 0.0, %v671
      %v673 = vpop.f32.mrb[0].mxu0
      %v674 = vpop.f32.mrb[0].mxu0
      %v675 = vpop.f32.mrb[0].mxu0
      %676 = vdwg.mxu0
      %v678 = vsel %vm336, %v582, 0
      %v681 = vsel %vm587, %v334, 0
      %683 = vmatprep.subr.bf16.mxu0 0
      %684 = vmatpush1.bf16.msra.mxu0 %v681
      %685 = vmatprep.subr.bf16.mxu0 0
      %686 = vmatpush1.bf16.msra.mxu0 0
      %687 = vmatprep.subr.bf16.mxu0 0
      %688 = vmatpush1.bf16.msra.mxu0 0
      %689 = vmatprep.subr.bf16.mxu0 0
      %690 = vmatpush1.bf16.msra.mxu0 0
      %691 = vmatprep.subr.bf16.mxu0 0
      %692 = vmatpush1.bf16.msra.mxu0 0
      %693 = vmatprep.subr.bf16.mxu0 0
      %694 = vmatpush1.bf16.msra.mxu0 0
      %695 = vmatprep.subr.bf16.mxu0 0
      %696 = vmatpush1.bf16.msra.mxu0 0
      %697 = vmatprep.subr.bf16.mxu0 0
      %698 = vmatpush1.bf16.msra.mxu0 0
      %699 = vmatprep.subr.bf16.mxu0 0
      %700 = vmatpush1.bf16.msra.mxu0 0
      %701 = vmatprep.subr.bf16.mxu0 0
      %702 = vmatpush1.bf16.msra.mxu0 0
      %703 = vmatprep.subr.bf16.mxu0 0
      %704 = vmatpush1.bf16.msra.mxu0 0
      %705 = vmatprep.subr.bf16.mxu0 0
      %706 = vmatpush1.bf16.msra.mxu0 0
      %707 = vmatprep.subr.bf16.mxu0 0
      %708 = vmatpush1.bf16.msra.mxu0 0
      %709 = vmatprep.subr.bf16.mxu0 0
      %710 = vmatpush1.bf16.msra.mxu0 0
      %711 = vmatprep.subr.bf16.mxu0 0
      %712 = vmatpush1.bf16.msra.mxu0 0
      %713 = vmatprep.subr.bf16.mxu0 0
      %714 = vmatpush1.bf16.msra.mxu0 0
      %715 = vmatprep.mubr.bf16.mxu0 0
      %716 = vmatmul.mubr.bf16.gmra.mrb[0].mxu0 %v678
      %v717 = vpop.f32.mrb[0].mxu0
      %v718 = vadd.f32 0.0, %v717
      %v719 = vpop.f32.mrb[0].mxu0
      %v720 = vpop.f32.mrb[0].mxu0
      %v721 = vpop.f32.mrb[0].mxu0
      %722 = vdwg.mxu0
      %v724 = vsel %vm336, %v583, 0
      %v727 = vsel %vm587, %v335, 0
      %729 = vmatprep.subr.bf16.mxu0 0
      %730 = vmatpush1.bf16.msra.mxu0 %v727
      %731 = vmatprep.subr.bf16.mxu0 0
      %732 = vmatpush1.bf16.msra.mxu0 0
      %733 = vmatprep.subr.bf16.mxu0 0
      %734 = vmatpush1.bf16.msra.mxu0 0
      %735 = vmatprep.subr.bf16.mxu0 0
      %736 = vmatpush1.bf16.msra.mxu0 0
      %737 = vmatprep.subr.bf16.mxu0 0
      %738 = vmatpush1.bf16.msra.mxu0 0
      %739 = vmatprep.subr.bf16.mxu0 0
      %740 = vmatpush1.bf16.msra.mxu0 0
      %741 = vmatprep.subr.bf16.mxu0 0
      %742 = vmatpush1.bf16.msra.mxu0 0
      %743 = vmatprep.subr.bf16.mxu0 0
      %744 = vmatpush1.bf16.msra.mxu0 0
      %745 = vmatprep.subr.bf16.mxu0 0
      %746 = vmatpush1.bf16.msra.mxu0 0
      %747 = vmatprep.subr.bf16.mxu0 0
      %748 = vmatpush1.bf16.msra.mxu0 0
      %749 = vmatprep.subr.bf16.mxu0 0
      %750 = vmatpush1.bf16.msra.mxu0 0
      %751 = vmatprep.subr.bf16.mxu0 0
      %752 = vmatpush1.bf16.msra.mxu0 0
      %753 = vmatprep.subr.bf16.mxu0 0
      %754 = vmatpush1.bf16.msra.mxu0 0
      %755 = vmatprep.subr.bf16.mxu0 0
      %756 = vmatpush1.bf16.msra.mxu0 0
      %757 = vmatprep.subr.bf16.mxu0 0
      %758 = vmatpush1.bf16.msra.mxu0 0
      %759 = vmatprep.subr.bf16.mxu0 0
      %760 = vmatpush1.bf16.msra.mxu0 0
      %761 = vmatprep.mubr.bf16.mxu0 0
      %762 = vmatmul.mubr.bf16.gmra.mrb[0].mxu0 %v724
      %v763 = vpop.f32.mrb[0].mxu0
      %v764 = vadd.f32 0.0, %v763
      %v765 = vpop.f32.mrb[0].mxu0
      %v766 = vpop.f32.mrb[0].mxu0
      %v767 = vpop.f32.mrb[0].mxu0
      %768 = vdwg.mxu0
      %v769 = vpack.c.bf16 %v626, %v626
      %v770 = vpack.c.bf16 %v672, %v672
      %v771 = vpack.c.bf16 %v718, %v718
      %v772 = vpack.c.bf16 %v764, %v764
      %vm773 = vcmask 60416
      %774 = vst.msk [vmem:[%s321] sm:$0xf] %vm773, %v769
      %775 = vst.msk [vmem:[%s321 + $0x4] sm:$0xf] %vm773, %v770
      %776 = vst.msk [vmem:[%s321 + $0x8] sm:$0xf] %vm773, %v771
      %777 = vst.msk [vmem:[%s321 + $0xc] sm:$0xf] %vm773, %v772
      %s778 = smul.u32 4, %s20
      %p779 = scmp.lt.s32.totalorder %s19, 1
      %s780 = scalar_select %p779, %s19, 1
      %p781 = scmp.lt.s32.totalorder %s778, 3
      %s782 = scalar_select %p781, %s778, 3
      %s783 = smul.addr %s780, 4
      %s784 = sadd.s32 %s782, %s783
      %s785 = smul.addr %s784, 4
      %s786 = scalar_lea.vmem %s4, %s785
      // Predicated region
      $region37: #{uniter_encoder_forward.7} parent=35 // pred_check
        %p787 = pneg %p157
      $region38: #{uniter_encoder_forward.7} parent=35 // pred_check_branch
        %789 = sbr.rel (%p787) target = $region40
      $region39: #{uniter_encoder_forward.7} parent=35 // pred_region
        %s790 = smul.u32 4, %s20
      $region40: #{uniter_encoder_forward.7} parent=35 // pred_fallthru
        _
    $region36: #{uniter_encoder_forward.7} parent=5 // pred_fallthru
      _
    %p791 = scmp.le.s32.totalorder 2, %s10
    // Predicated region
    $region41: #{uniter_encoder_forward.7} parent=5 // pred_check
      %p792 = pneg %p791
    $region42: #{uniter_encoder_forward.7} parent=5 // pred_check_branch
      %794 = sbr.rel (%p792) target = $region44
    $region43: #{uniter_encoder_forward.7} parent=5 // pred_region
      %s795 = ssub.s32 %s10, 2
      // Predicated region
      $region45: #{uniter_encoder_forward.7} parent=43 // pred_check
        %p796 = pneg %p163
      $region46: #{uniter_encoder_forward.7} parent=43 // pred_check_branch
        %798 = sbr.rel (%p796) target = $region48
      $region47: #{uniter_encoder_forward.7} parent=43 // pred_region
        %s799 = smul.u32 4, %s22
        %p800 = scmp.lt.s32.totalorder %s21, 1
        %s801 = scalar_select %p800, %s21, 1
        %p802 = scmp.lt.s32.totalorder %s799, 3
        %s803 = scalar_select %p802, %s799, 3
        %s804 = smul.addr %s801, 4
        %s805 = sadd.s32 %s803, %s804
        %s806 = smul.addr %s805, 4
        %s807 = scalar_lea.vmem %s4, %s806
      $region48: #{uniter_encoder_forward.7} parent=43 // pred_fallthru
        _
    $region44: #{uniter_encoder_forward.7} parent=5 // pred_fallthru
      _
  $region6: #{uniter_encoder_forward.7} parent=0 // loop_footer
    %s14 = sadd.s32 1, %s10
  $region7: #{uniter_encoder_forward.7} parent=0 // loop_footer_branch
    %9 = sbr.rel target = $region3
  $region8: #{uniter_encoder_forward.7} parent=0 // loop_exit
    _

// kernel: uniter_encoder_forward.6
$region0: #{uniter_encoder_forward.6}
  #allocation0 [shape = 'u32[]', space=smem, size = 0x4, offset = 0x4, fixed_abs, tag = 'smem constant byte address 0x4 - core index']
  #allocation1 [shape = 'u32[144,128]{1,0:T(1,128)}', space=vmem, size = 0x12000, scoped, tag = 'internal scratch']
  %s0 = inlined_call_operand.vmem [shape: f32[16,32], index: 0, kind: input, shape index: {}]
  %s1 = inlined_call_operand.vmem [shape: bf16[32,96], index: 1, kind: input, shape index: {}]
  %s2 = inlined_call_operand.vmem [shape: f32[1,96], index: 2, kind: input, shape index: {}]
  %s3 = inlined_call_operand.vmem [shape: bf16[16,96], index: 3, kind: output, shape index: {}]
  %s4 = sld [smem:[#allocation0]]
  $region22: #{uniter_encoder_forward.6} parent=0
    _
  %s6 = ssub.s32 1, %s4
  %s7 = scalar_select 0, %s6, %s4
  // Predicated region
  $region2: #{uniter_encoder_forward.6} parent=0 // pred_check
    _
  $region3: #{uniter_encoder_forward.6} parent=0 // pred_check_branch
    %9 = sbr.rel (0) target = $region5
  $region4: #{uniter_encoder_forward.6} parent=0 // pred_region
    _
  $region5: #{uniter_encoder_forward.6} parent=0 // pred_fallthru
    _
  // Predicated region
  $region6: #{uniter_encoder_forward.6} parent=0 // pred_check
    _
  $region7: #{uniter_encoder_forward.6} parent=0 // pred_check_branch
    %11 = sbr.rel (0) target = $region9
  $region8: #{uniter_encoder_forward.6} parent=0 // pred_region
    _
  $region9: #{uniter_encoder_forward.6} parent=0 // pred_fallthru
    _
  // Predicated region
  $region10: #{uniter_encoder_forward.6} parent=0 // pred_check
    _
  $region11: #{uniter_encoder_forward.6} parent=0 // pred_check_branch
    %13 = sbr.rel (0) target = $region13
  $region12: #{uniter_encoder_forward.6} parent=0 // pred_region
    _
  $region13: #{uniter_encoder_forward.6} parent=0 // pred_fallthru
    _
  %v15 = vld [vmem:[%s0] sm:$0xff]
  %v16 = vld [vmem:[%s0 + $0x8] sm:$0xff]
  %v17 = vpack.c.bf16 %v16, %v15
  %v18 = vld [vmem:[%s1] sm:$0xf]
  %v19 = vld [vmem:[%s1 + $0x4] sm:$0xf]
  %v20 = vld [vmem:[%s1 + $0x8] sm:$0xf]
  %v21 = vld [vmem:[%s1 + $0xc] sm:$0xf]
  %v22 = vld [vmem:[%s2] sm:$0x1]
  %v24 = vlaneseq
  %v25 = vshrl.u32 %v24, 7
  %v26 = vsub.s32 0, %v25
  %v27 = vrot.slane %v22, %v26
  %v33 = vunpack.c.l.b16 %v18
  %v34 = vunpack.c.l.b16 %v19
  %v35 = vunpack.c.l.b16 %v20
  %v36 = vunpack.c.l.b16 %v21
  %v37 = vpack.c.b16 %v34, %v33
  %v38 = vpack.c.b16 %v36, %v35
  %vm41 = vcmask 261120
  %v43 = vsel %vm41, %v17, 0
  %45 = vmatprep.subr.bf16.mxu0 0
  %46 = vmatpush1.bf16.msra.mxu0 %v37
  %47 = vmatprep.subr.bf16.mxu0 0
  %48 = vmatpush1.bf16.msra.mxu0 %v38
  %49 = vmatprep.subr.bf16.mxu0 0
  %50 = vmatpush1.bf16.msra.mxu0 0
  %51 = vmatprep.subr.bf16.mxu0 0
  %52 = vmatpush1.bf16.msra.mxu0 0
  %53 = vmatprep.subr.bf16.mxu0 0
  %54 = vmatpush1.bf16.msra.mxu0 0
  %55 = vmatprep.subr.bf16.mxu0 0
  %56 = vmatpush1.bf16.msra.mxu0 0
  %57 = vmatprep.subr.bf16.mxu0 0
  %58 = vmatpush1.bf16.msra.mxu0 0
  %59 = vmatprep.subr.bf16.mxu0 0
  %60 = vmatpush1.bf16.msra.mxu0 0
  %61 = vmatprep.subr.bf16.mxu0 0
  %62 = vmatpush1.bf16.msra.mxu0 0
  %63 = vmatprep.subr.bf16.mxu0 0
  %64 = vmatpush1.bf16.msra.mxu0 0
  %65 = vmatprep.subr.bf16.mxu0 0
  %66 = vmatpush1.bf16.msra.mxu0 0
  %67 = vmatprep.subr.bf16.mxu0 0
  %68 = vmatpush1.bf16.msra.mxu0 0
  %69 = vmatprep.subr.bf16.mxu0 0
  %70 = vmatpush1.bf16.msra.mxu0 0
  %71 = vmatprep.subr.bf16.mxu0 0
  %72 = vmatpush1.bf16.msra.mxu0 0
  %73 = vmatprep.subr.bf16.mxu0 0
  %74 = vmatpush1.bf16.msra.mxu0 0
  %75 = vmatprep.subr.bf16.mxu0 0
  %76 = vmatpush1.bf16.msra.mxu0 0
  %77 = vmatprep.mubr.bf16.mxu0 0
  %78 = vmatmul.mubr.bf16.gmra.mrb[0].mxu0 %v43
  %v79 = vpop.f32.mrb[0].mxu0
  %v80 = vadd.f32 %v27, %v79
  %v81 = vpop.f32.mrb[0].mxu0
  %v82 = vpop.f32.mrb[0].mxu0
  %v83 = vadd.f32 %v27, %v82
  %v84 = vpop.f32.mrb[0].mxu0
  %85 = vdwg.mxu0
  %v86 = vpack.c.bf16 %v83, %v80
  %v88 = vunpack.c.l.b16 %v86
  %v89 = vunpack.c.h.b16 %v86
  %v90 = vpack.c.b16 %v88, %v88
  %v91 = vpack.c.b16 %v89, %v89
  %vm94 = vcmask 781312
  %95 = vst.msk [vmem:[%s3] sm:$0xf] %vm94, %v90
  %96 = vst.msk [vmem:[%s3 + $0x4] sm:$0xf] %vm94, %v91
  // Predicated region
  $region14: #{uniter_encoder_forward.6} parent=0 // pred_check
    _
  $region15: #{uniter_encoder_forward.6} parent=0 // pred_check_branch
    %98 = sbr.rel (0) target = $region17
  $region16: #{uniter_encoder_forward.6} parent=0 // pred_region
    _
  $region17: #{uniter_encoder_forward.6} parent=0 // pred_fallthru
    _
  // Predicated region
  $region18: #{uniter_encoder_forward.6} parent=0 // pred_check
    _
  $region19: #{uniter_encoder_forward.6} parent=0 // pred_check_branch
    %100 = sbr.rel (0) target = $region21
  $region20: #{uniter_encoder_forward.6} parent=0 // pred_region
    _
  $region21: #{uniter_encoder_forward.6} parent=0 // pred_fallthru
    _

// kernel: uniter_encoder_forward.8
$region0: #{uniter_encoder_forward.8}
  #allocation0 [shape = 'u32[]', space=smem, size = 0x4, offset = 0x4, fixed_abs, tag = 'smem constant byte address 0x4 - core index']
  #allocation1 [shape = 'u32[144,128]{1,0:T(1,128)}', space=vmem, size = 0x12000, scoped, tag = 'internal scratch']
  %s0 = inlined_call_operand.vmem [shape: f32[16,32], index: 0, kind: input, shape index: {}]
  %s1 = inlined_call_operand.vmem [shape: bf16[16,32], index: 1, kind: input, shape index: {}]
  %s2 = inlined_call_operand.vmem [shape: bf16[32,32], index: 2, kind: input, shape index: {}]
  %s3 = inlined_call_operand.vmem [shape: f32[1,32], index: 3, kind: input, shape index: {}]
  %s4 = inlined_call_operand.vmem [shape: f32[1,32], index: 4, kind: input, shape index: {}]
  %s5 = inlined_call_operand.vmem [shape: f32[1,32], index: 5, kind: input, shape index: {}]
  %s6 = inlined_call_operand.vmem [shape: bf16[32,64], index: 6, kind: input, shape index: {}]
  %s7 = inlined_call_operand.vmem [shape: f32[1,64], index: 7, kind: input, shape index: {}]
  %s8 = inlined_call_operand.vmem [shape: bf16[64,32], index: 8, kind: input, shape index: {}]
  %s9 = inlined_call_operand.vmem [shape: f32[1,32], index: 9, kind: input, shape index: {}]
  %s10 = inlined_call_operand.vmem [shape: f32[1,32], index: 10, kind: input, shape index: {}]
  %s11 = inlined_call_operand.vmem [shape: f32[1,32], index: 11, kind: input, shape index: {}]
  %s12 = inlined_call_operand.vmem [shape: f32[16,32], index: 12, kind: output, shape index: {}]
  %s13 = sld [smem:[#allocation0]]
  $region58: #{uniter_encoder_forward.8} parent=0
    _
  %s15 = ssub.s32 1, %s13
  %s16 = scalar_select 0, %s15, %s13
  // Predicated region
  $region2: #{uniter_encoder_forward.8} parent=0 // pred_check
    _
  $region3: #{uniter_encoder_forward.8} parent=0 // pred_check_branch
    %18 = sbr.rel (0) target = $region5
  $region4: #{uniter_encoder_forward.8} parent=0 // pred_region
    _
  $region5: #{uniter_encoder_forward.8} parent=0 // pred_fallthru
    _
  // Predicated region
  $region6: #{uniter_encoder_forward.8} parent=0 // pred_check
    _
  $region7: #{uniter_encoder_forward.8} parent=0 // pred_check_branch
    %20 = sbr.rel (0) target = $region9
  $region8: #{uniter_encoder_forward.8} parent=0 // pred_region
    _
  $region9: #{uniter_encoder_forward.8} parent=0 // pred_fallthru
    _
  // Predicated region
  $region10: #{uniter_encoder_forward.8} parent=0 // pred_check
    _
  $region11: #{uniter_encoder_forward.8} parent=0 // pred_check_branch
    %22 = sbr.rel (0) target = $region13
  $region12: #{uniter_encoder_forward.8} parent=0 // pred_region
    _
  $region13: #{uniter_encoder_forward.8} parent=0 // pred_fallthru
    _
  // Predicated region
  $region14: #{uniter_encoder_forward.8} parent=0 // pred_check
    _
  $region15: #{uniter_encoder_forward.8} parent=0 // pred_check_branch
    %24 = sbr.rel (0) target = $region17
  $region16: #{uniter_encoder_forward.8} parent=0 // pred_region
    _
  $region17: #{uniter_encoder_forward.8} parent=0 // pred_fallthru
    _
  // Predicated region
  $region18: #{uniter_encoder_forward.8} parent=0 // pred_check
    _
  $region19: #{uniter_encoder_forward.8} parent=0 // pred_check_branch
    %26 = sbr.rel (0) target = $region21
  $region20: #{uniter_encoder_forward.8} parent=0 // pred_region
    _
  $region21: #{uniter_encoder_forward.8} parent=0 // pred_fallthru
    _
  // Predicated region
  $region22: #{uniter_encoder_forward.8} parent=0 // pred_check
    _
  $region23: #{uniter_encoder_forward.8} parent=0 // pred_check_branch
    %28 = sbr.rel (0) target = $region25
  $region24: #{uniter_encoder_forward.8} parent=0 // pred_region
    _
  $region25: #{uniter_encoder_forward.8} parent=0 // pred_fallthru
    _
  // Predicated region
  $region26: #{uniter_encoder_forward.8} parent=0 // pred_check
    _
  $region27: #{uniter_encoder_forward.8} parent=0 // pred_check_branch
    %30 = sbr.rel (0) target = $region29
  $region28: #{uniter_encoder_forward.8} parent=0 // pred_region
    _
  $region29: #{uniter_encoder_forward.8} parent=0 // pred_fallthru
    _
  // Predicated region
  $region30: #{uniter_encoder_forward.8} parent=0 // pred_check
    _
  $region31: #{uniter_encoder_forward.8} parent=0 // pred_check_branch
    %32 = sbr.rel (0) target = $region33
  $region32: #{uniter_encoder_forward.8} parent=0 // pred_region
    _
  $region33: #{uniter_encoder_forward.8} parent=0 // pred_fallthru
    _
  // Predicated region
  $region34: #{uniter_encoder_forward.8} parent=0 // pred_check
    _
  $region35: #{uniter_encoder_forward.8} parent=0 // pred_check_branch
    %34 = sbr.rel (0) target = $region37
  $region36: #{uniter_encoder_forward.8} parent=0 // pred_region
    _
  $region37: #{uniter_encoder_forward.8} parent=0 // pred_fallthru
    _
  // Predicated region
  $region38: #{uniter_encoder_forward.8} parent=0 // pred_check
    _
  $region39: #{uniter_encoder_forward.8} parent=0 // pred_check_branch
    %36 = sbr.rel (0) target = $region41
  $region40: #{uniter_encoder_forward.8} parent=0 // pred_region
    _
  $region41: #{uniter_encoder_forward.8} parent=0 // pred_fallthru
    _
  // Predicated region
  $region42: #{uniter_encoder_forward.8} parent=0 // pred_check
    _
  $region43: #{uniter_encoder_forward.8} parent=0 // pred_check_branch
    %38 = sbr.rel (0) target = $region45
  $region44: #{uniter_encoder_forward.8} parent=0 // pred_region
    _
  $region45: #{uniter_encoder_forward.8} parent=0 // pred_fallthru
    _
  // Predicated region
  $region46: #{uniter_encoder_forward.8} parent=0 // pred_check
    _
  $region47: #{uniter_encoder_forward.8} parent=0 // pred_check_branch
    %40 = sbr.rel (0) target = $region49
  $region48: #{uniter_encoder_forward.8} parent=0 // pred_region
    _
  $region49: #{uniter_encoder_forward.8} parent=0 // pred_fallthru
    _
  %v42 = vld [vmem:[%s0] sm:$0xff]
  %v43 = vld [vmem:[%s0 + $0x8] sm:$0xff]
  %v44 = vld [vmem:[%s1] sm:$0xf]
  %v45 = vld [vmem:[%s1 + $0x4] sm:$0xf]
  %v46 = vld [vmem:[%s2] sm:$0xf]
  %v47 = vld [vmem:[%s2 + $0x4] sm:$0xf]
  %v48 = vld [vmem:[%s2 + $0x8] sm:$0xf]
  %v49 = vld [vmem:[%s2 + $0xc] sm:$0xf]
  %v50 = vld [vmem:[%s3] sm:$0x1]
  %v52 = vlaneseq
  %v53 = vshrl.u32 %v52, 7
  %v54 = vsub.s32 0, %v53
  %v55 = vrot.slane %v50, %v54
  %v59 = vunpack.c.l.b16 %v44
  %v60 = vunpack.c.l.b16 %v45
  %v61 = vpack.c.b16 %v60, %v59
  %v66 = vunpack.c.l.b16 %v46
  %v67 = vunpack.c.l.b16 %v47
  %v68 = vunpack.c.l.b16 %v48
  %v69 = vunpack.c.l.b16 %v49
  %v70 = vpack.c.b16 %v67, %v66
  %v71 = vpack.c.b16 %v69, %v68
  %vm74 = vcmask 261120
  %v76 = vsel %vm74, %v61, 0
  %78 = vmatprep.subr.bf16.mxu0 0
  %79 = vmatpush1.bf16.msra.mxu0 %v70
  %80 = vmatprep.subr.bf16.mxu0 0
  %81 = vmatpush1.bf16.msra.mxu0 %v71
  %82 = vmatprep.subr.bf16.mxu0 0
  %83 = vmatpush1.bf16.msra.mxu0 0
  %84 = vmatprep.subr.bf16.mxu0 0
  %85 = vmatpush1.bf16.msra.mxu0 0
  %86 = vmatprep.subr.bf16.mxu0 0
  %87 = vmatpush1.bf16.msra.mxu0 0
  %88 = vmatprep.subr.bf16.mxu0 0
  %89 = vmatpush1.bf16.msra.mxu0 0
  %90 = vmatprep.subr.bf16.mxu0 0
  %91 = vmatpush1.bf16.msra.mxu0 0
  %92 = vmatprep.subr.bf16.mxu0 0
  %93 = vmatpush1.bf16.msra.mxu0 0
  %94 = vmatprep.subr.bf16.mxu0 0
  %95 = vmatpush1.bf16.msra.mxu0 0
  %96 = vmatprep.subr.bf16.mxu0 0
  %97 = vmatpush1.bf16.msra.mxu0 0
  %98 = vmatprep.subr.bf16.mxu0 0
  %99 = vmatpush1.bf16.msra.mxu0 0
  %100 = vmatprep.subr.bf16.mxu0 0
  %101 = vmatpush1.bf16.msra.mxu0 0
  %102 = vmatprep.subr.bf16.mxu0 0
  %103 = vmatpush1.bf16.msra.mxu0 0
  %104 = vmatprep.subr.bf16.mxu0 0
  %105 = vmatpush1.bf16.msra.mxu0 0
  %106 = vmatprep.subr.bf16.mxu0 0
  %107 = vmatpush1.bf16.msra.mxu0 0
  %108 = vmatprep.subr.bf16.mxu0 0
  %109 = vmatpush1.bf16.msra.mxu0 0
  %110 = vmatprep.mubr.bf16.mxu0 0
  %111 = vmatmul.mubr.bf16.gmra.mrb[0].mxu0 %v76
  %v112 = vpop.f32.mrb[0].mxu0
  %v113 = vadd.f32 %v55, %v112
  %v114 = vpop.f32.mrb[0].mxu0
  %v115 = vpop.f32.mrb[0].mxu0
  %v116 = vadd.f32 %v55, %v115
  %v117 = vpop.f32.mrb[0].mxu0
  %118 = vdwg.mxu0
  %v119 = vadd.f32 %v113, %v42
  %v120 = vadd.f32 %v116, %v43
  %v121 = vld [vmem:[%s4] sm:$0x1]
  %v122 = vld [vmem:[%s5] sm:$0x1]
  %v123 = vsel %vm74, %v119, 0.0
  %124 = vadd.xlane.f32.xlu0 %v123
  %v125 = vpop.xlane.xlu0 %124
  %v126 = vsel %vm74, %v120, 0.0
  %127 = vadd.xlane.f32.xlu0 %v126
  %v128 = vpop.xlane.xlu0 %127
  %v129 = vrcp.pop 32.0
  %v130 = vmul.f32 %v125, %v129
  %v131 = vmul.f32 %v128, %v129
  %v132 = vsub.f32 %v119, %v130
  %v133 = vsub.f32 %v120, %v131
  %v134 = vmul.f32 %v132, %v132
  %v135 = vmul.f32 %v133, %v133
  %v136 = vsel %vm74, %v134, 0.0
  %137 = vadd.xlane.f32.xlu0 %v136
  %v138 = vpop.xlane.xlu0 %137
  %v139 = vsel %vm74, %v135, 0.0
  %140 = vadd.xlane.f32.xlu0 %v139
  %v141 = vpop.xlane.xlu0 %140
  %v142 = vmul.f32 %v138, %v129
  %v143 = vmul.f32 %v141, %v129
  %v144 = vadd.f32 %v142, 1e-12
  %v145 = vadd.f32 %v143, 1e-12
  %v146 = vrsqrt.pop %v144
  %v147 = vrsqrt.pop %v145
  %v148 = vmul.f32 %v132, %v146
  %v149 = vmul.f32 %v133, %v147
  %v151 = vlaneseq
  %v152 = vshrl.u32 %v151, 7
  %v153 = vsub.s32 0, %v152
  %v154 = vrot.slane %v121, %v153
  %v156 = vmul.f32 %v148, %v154
  %v157 = vmul.f32 %v149, %v154
  %v159 = vlaneseq
  %v160 = vshrl.u32 %v159, 7
  %v161 = vsub.s32 0, %v160
  %v162 = vrot.slane %v122, %v161
  %v164 = vadd.f32 %v156, %v162
  %v165 = vadd.f32 %v157, %v162
  %v166 = vpack.c.bf16 %v165, %v164
  %v167 = vld [vmem:[%s6] sm:$0xf]
  %v168 = vld [vmem:[%s6 + $0x4] sm:$0xf]
  %v169 = vld [vmem:[%s6 + $0x8] sm:$0xf]
  %v170 = vld [vmem:[%s6 + $0xc] sm:$0xf]
  %v171 = vld [vmem:[%s7] sm:$0x1]
  %v173 = vlaneseq
  %v174 = vshrl.u32 %v173, 7
  %v175 = vsub.s32 0, %v174
  %v176 = vrot.slane %v171, %v175
  %v182 = vunpack.c.l.b16 %v167
  %v183 = vunpack.c.l.b16 %v168
  %v184 = vunpack.c.l.b16 %v169
  %v185 = vunpack.c.l.b16 %v170
  %v186 = vpack.c.b16 %v183, %v182
  %v187 = vpack.c.b16 %v185, %v184
  %v191 = vsel %vm74, %v166, 0
  %193 = vmatprep.subr.bf16.mxu0 0
  %194 = vmatpush1.bf16.msra.mxu0 %v186
  %195 = vmatprep.subr.bf16.mxu0 0
  %196 = vmatpush1.bf16.msra.mxu0 %v187
  %197 = vmatprep.subr.bf16.mxu0 0
  %198 = vmatpush1.bf16.msra.mxu0 0
  %199 = vmatprep.subr.bf16.mxu0 0
  %200 = vmatpush1.bf16.msra.mxu0 0
  %201 = vmatprep.subr.bf16.mxu0 0
  %202 = vmatpush1.bf16.msra.mxu0 0
  %203 = vmatprep.subr.bf16.mxu0 0
  %204 = vmatpush1.bf16.msra.mxu0 0
  %205 = vmatprep.subr.bf16.mxu0 0
  %206 = vmatpush1.bf16.msra.mxu0 0
  %207 = vmatprep.subr.bf16.mxu0 0
  %208 = vmatpush1.bf16.msra.mxu0 0
  %209 = vmatprep.subr.bf16.mxu0 0
  %210 = vmatpush1.bf16.msra.mxu0 0
  %211 = vmatprep.subr.bf16.mxu0 0
  %212 = vmatpush1.bf16.msra.mxu0 0
  %213 = vmatprep.subr.bf16.mxu0 0
  %214 = vmatpush1.bf16.msra.mxu0 0
  %215 = vmatprep.subr.bf16.mxu0 0
  %216 = vmatpush1.bf16.msra.mxu0 0
  %217 = vmatprep.subr.bf16.mxu0 0
  %218 = vmatpush1.bf16.msra.mxu0 0
  %219 = vmatprep.subr.bf16.mxu0 0
  %220 = vmatpush1.bf16.msra.mxu0 0
  %221 = vmatprep.subr.bf16.mxu0 0
  %222 = vmatpush1.bf16.msra.mxu0 0
  %223 = vmatprep.subr.bf16.mxu0 0
  %224 = vmatpush1.bf16.msra.mxu0 0
  %225 = vmatprep.mubr.bf16.mxu0 0
  %226 = vmatmul.mubr.bf16.gmra.mrb[0].mxu0 %v191
  %v227 = vpop.f32.mrb[0].mxu0
  %v228 = vadd.f32 %v176, %v227
  %v229 = vpop.f32.mrb[0].mxu0
  %v230 = vpop.f32.mrb[0].mxu0
  %v231 = vadd.f32 %v176, %v230
  %v232 = vpop.f32.mrb[0].mxu0
  %233 = vdwg.mxu0
  %v234 = vmul.f32 %v228, 0.5
  %v235 = vmul.f32 %v231, 0.5
  %v236 = vmul.f32 %v228, 0.70710677
  %v237 = vmul.f32 %v231, 0.70710677
  %v238 = verf.f32.pop %v236
  %v239 = verf.f32.pop %v237
  %v240 = vadd.f32 %v238, 1.0
  %v241 = vadd.f32 %v239, 1.0
  %v242 = vmul.f32 %v234, %v240
  %v243 = vmul.f32 %v235, %v241
  %v244 = vpack.c.bf16 %v243, %v242
  %v245 = vld [vmem:[%s8] sm:$0xf]
  %v246 = vld [vmem:[%s8 + $0x4] sm:$0xf]
  %v247 = vld [vmem:[%s8 + $0x8] sm:$0xf]
  %v248 = vld [vmem:[%s8 + $0xc] sm:$0xf]
  %v249 = vld [vmem:[%s8 + $0x10] sm:$0xf]
  %v250 = vld [vmem:[%s8 + $0x14] sm:$0xf]
  %v251 = vld [vmem:[%s8 + $0x18] sm:$0xf]
  %v252 = vld [vmem:[%s8 + $0x1c] sm:$0xf]
  %v253 = vld [vmem:[%s9] sm:$0x1]
  %v255 = vlaneseq
  %v256 = vshrl.u32 %v255, 7
  %v257 = vsub.s32 0, %v256
  %v258 = vrot.slane %v253, %v257
  %v268 = vunpack.c.l.b16 %v245
  %v269 = vunpack.c.l.b16 %v246
  %v270 = vunpack.c.l.b16 %v247
  %v271 = vunpack.c.l.b16 %v248
  %v272 = vunpack.c.l.b16 %v249
  %v273 = vunpack.c.l.b16 %v250
  %v274 = vunpack.c.l.b16 %v251
  %v275 = vunpack.c.l.b16 %v252
  %v276 = vpack.c.b16 %v269, %v268
  %v277 = vpack.c.b16 %v271, %v270
  %v278 = vpack.c.b16 %v273, %v272
  %v279 = vpack.c.b16 %v275, %v274
  %vm284 = vcmask 523264
  %v286 = vsel %vm284, %v244, 0
  %288 = vmatprep.subr.bf16.mxu0 0
  %289 = vmatpush1.bf16.msra.mxu0 %v276
  %290 = vmatprep.subr.bf16.mxu0 0
  %291 = vmatpush1.bf16.msra.mxu0 %v277
  %292 = vmatprep.subr.bf16.mxu0 0
  %293 = vmatpush1.bf16.msra.mxu0 %v278
  %294 = vmatprep.subr.bf16.mxu0 0
  %295 = vmatpush1.bf16.msra.mxu0 %v279
  %296 = vmatprep.subr.bf16.mxu0 0
  %297 = vmatpush1.bf16.msra.mxu0 0
  %298 = vmatprep.subr.bf16.mxu0 0
  %299 = vmatpush1.bf16.msra.mxu0 0
  %300 = vmatprep.subr.bf16.mxu0 0
  %301 = vmatpush1.bf16.msra.mxu0 0
  %302 = vmatprep.subr.bf16.mxu0 0
  %303 = vmatpush1.bf16.msra.mxu0 0
  %304 = vmatprep.subr.bf16.mxu0 0
  %305 = vmatpush1.bf16.msra.mxu0 0
  %306 = vmatprep.subr.bf16.mxu0 0
  %307 = vmatpush1.bf16.msra.mxu0 0
  %308 = vmatprep.subr.bf16.mxu0 0
  %309 = vmatpush1.bf16.msra.mxu0 0
  %310 = vmatprep.subr.bf16.mxu0 0
  %311 = vmatpush1.bf16.msra.mxu0 0
  %312 = vmatprep.subr.bf16.mxu0 0
  %313 = vmatpush1.bf16.msra.mxu0 0
  %314 = vmatprep.subr.bf16.mxu0 0
  %315 = vmatpush1.bf16.msra.mxu0 0
  %316 = vmatprep.subr.bf16.mxu0 0
  %317 = vmatpush1.bf16.msra.mxu0 0
  %318 = vmatprep.subr.bf16.mxu0 0
  %319 = vmatpush1.bf16.msra.mxu0 0
  %320 = vmatprep.mubr.bf16.mxu0 0
  %321 = vmatmul.mubr.bf16.gmra.mrb[0].mxu0 %v286
  %v322 = vpop.f32.mrb[0].mxu0
  %v323 = vadd.f32 %v258, %v322
  %v324 = vpop.f32.mrb[0].mxu0
  %v325 = vpop.f32.mrb[0].mxu0
  %v326 = vadd.f32 %v258, %v325
  %v327 = vpop.f32.mrb[0].mxu0
  %328 = vdwg.mxu0
  %v329 = vadd.f32 %v323, %v164
  %v330 = vadd.f32 %v326, %v165
  %v331 = vld [vmem:[%s10] sm:$0x1]
  %v332 = vld [vmem:[%s11] sm:$0x1]
  %v333 = vsel %vm74, %v329, 0.0
  %334 = vadd.xlane.f32.xlu0 %v333
  %v335 = vpop.xlane.xlu0 %334
  %v336 = vsel %vm74, %v330, 0.0
  %337 = vadd.xlane.f32.xlu0 %v336
  %v338 = vpop.xlane.xlu0 %337
  %v339 = vmul.f32 %v335, %v129
  %v340 = vmul.f32 %v338, %v129
  %v341 = vsub.f32 %v329, %v339
  %v342 = vsub.f32 %v330, %v340
  %v343 = vmul.f32 %v341, %v341
  %v344 = vmul.f32 %v342, %v342
  %v345 = vsel %vm74, %v343, 0.0
  %346 = vadd.xlane.f32.xlu0 %v345
  %v347 = vpop.xlane.xlu0 %346
  %v348 = vsel %vm74, %v344, 0.0
  %349 = vadd.xlane.f32.xlu0 %v348
  %v350 = vpop.xlane.xlu0 %349
  %v351 = vmul.f32 %v347, %v129
  %v352 = vmul.f32 %v350, %v129
  %v353 = vadd.f32 %v351, 1e-12
  %v354 = vadd.f32 %v352, 1e-12
  %v355 = vrsqrt.pop %v353
  %v356 = vrsqrt.pop %v354
  %v357 = vmul.f32 %v341, %v355
  %v358 = vmul.f32 %v342, %v356
  %v360 = vlaneseq
  %v361 = vshrl.u32 %v360, 7
  %v362 = vsub.s32 0, %v361
  %v363 = vrot.slane %v331, %v362
  %v365 = vmul.f32 %v357, %v363
  %v366 = vmul.f32 %v358, %v363
  %v368 = vlaneseq
  %v369 = vshrl.u32 %v368, 7
  %v370 = vsub.s32 0, %v369
  %v371 = vrot.slane %v332, %v370
  %v373 = vadd.f32 %v365, %v371
  %v374 = vadd.f32 %v366, %v371
  %375 = vst.msk [vmem:[%s12] sm:$0xff] %vm74, %v373
  %376 = vst.msk [vmem:[%s12 + $0x8] sm:$0xff] %vm74, %v374
  // Predicated region
  $region50: #{uniter_encoder_forward.8} parent=0 // pred_check
    _
  $region51: #{uniter_encoder_forward.8} parent=0 // pred_check_branch
    %378 = sbr.rel (0) target = $region53
  $region52: #{uniter_encoder_forward.8} parent=0 // pred_region
    _
  $region53: #{uniter_encoder_forward.8} parent=0 // pred_fallthru
    _
  // Predicated region
  $region54: #{uniter_encoder_forward.8} parent=0 // pred_check
    _
  $region55: #{uniter_encoder_forward.8} parent=0 // pred_check_branch
    %380 = sbr.rel (0) target = $region57
  $region56: #{uniter_encoder_forward.8} parent=0 // pred_region
    _
  $region57: #{uniter_encoder_forward.8} parent=0 // pred_fallthru
    _

// kernel: uniter_encoder_forward.11
$region0: #{uniter_encoder_forward.11}
  #allocation0 [shape = 'u32[]', space=smem, size = 0x4, offset = 0x4, fixed_abs, tag = 'smem constant byte address 0x4 - core index']
  #allocation1 [shape = 'u32[144,128]{1,0:T(1,128)}', space=vmem, size = 0x12000, scoped, tag = 'internal scratch']
  %s0 = inlined_call_operand.vmem [shape: f32[16,32], index: 0, kind: input, shape index: {}]
  %s1 = inlined_call_operand.vmem [shape: bf16[16,32], index: 1, kind: input, shape index: {}]
  %s2 = inlined_call_operand.vmem [shape: bf16[32,32], index: 2, kind: input, shape index: {}]
  %s3 = inlined_call_operand.vmem [shape: f32[1,32], index: 3, kind: input, shape index: {}]
  %s4 = inlined_call_operand.vmem [shape: f32[1,32], index: 4, kind: input, shape index: {}]
  %s5 = inlined_call_operand.vmem [shape: f32[1,32], index: 5, kind: input, shape index: {}]
  %s6 = inlined_call_operand.vmem [shape: bf16[32,64], index: 6, kind: input, shape index: {}]
  %s7 = inlined_call_operand.vmem [shape: f32[1,64], index: 7, kind: input, shape index: {}]
  %s8 = inlined_call_operand.vmem [shape: bf16[64,32], index: 8, kind: input, shape index: {}]
  %s9 = inlined_call_operand.vmem [shape: f32[1,32], index: 9, kind: input, shape index: {}]
  %s10 = inlined_call_operand.vmem [shape: f32[1,32], index: 10, kind: input, shape index: {}]
  %s11 = inlined_call_operand.vmem [shape: f32[1,32], index: 11, kind: input, shape index: {}]
  %s12 = inlined_call_operand.hbm [shape: f32[16,32], index: 12, kind: output, shape index: {}]
  %s13 = sld [smem:[#allocation0]]
  $region58: #{uniter_encoder_forward.11} parent=0
    _
  %s15 = ssub.s32 1, %s13
  %s16 = scalar_select 0, %s15, %s13
  $region1: #{uniter_encoder_forward.11} parent=0
    #allocation2 [shape = 'u8[8192]{0}', space=vmem, size = 0x2000, scoped, tag = 'output window, operand 0, single buffered']
    #allocation3 [shape = 's32[1]{0}', space=sflag, size = 0x4, scoped, tag = 'scoped memory for uniter_encoder_forward.11']
    %17 = vsyncpa [#allocation3], 0
    // Predicated region
    $region2: #{uniter_encoder_forward.11} parent=1 // pred_check
      _
    $region3: #{uniter_encoder_forward.11} parent=1 // pred_check_branch
      %19 = sbr.rel (0) target = $region5
    $region4: #{uniter_encoder_forward.11} parent=1 // pred_region
      _
    $region5: #{uniter_encoder_forward.11} parent=1 // pred_fallthru
      _
    // Predicated region
    $region6: #{uniter_encoder_forward.11} parent=1 // pred_check
      _
    $region7: #{uniter_encoder_forward.11} parent=1 // pred_check_branch
      %21 = sbr.rel (0) target = $region9
    $region8: #{uniter_encoder_forward.11} parent=1 // pred_region
      _
    $region9: #{uniter_encoder_forward.11} parent=1 // pred_fallthru
      _
    // Predicated region
    $region10: #{uniter_encoder_forward.11} parent=1 // pred_check
      _
    $region11: #{uniter_encoder_forward.11} parent=1 // pred_check_branch
      %23 = sbr.rel (0) target = $region13
    $region12: #{uniter_encoder_forward.11} parent=1 // pred_region
      _
    $region13: #{uniter_encoder_forward.11} parent=1 // pred_fallthru
      _
    // Predicated region
    $region14: #{uniter_encoder_forward.11} parent=1 // pred_check
      _
    $region15: #{uniter_encoder_forward.11} parent=1 // pred_check_branch
      %25 = sbr.rel (0) target = $region17
    $region16: #{uniter_encoder_forward.11} parent=1 // pred_region
      _
    $region17: #{uniter_encoder_forward.11} parent=1 // pred_fallthru
      _
    // Predicated region
    $region18: #{uniter_encoder_forward.11} parent=1 // pred_check
      _
    $region19: #{uniter_encoder_forward.11} parent=1 // pred_check_branch
      %27 = sbr.rel (0) target = $region21
    $region20: #{uniter_encoder_forward.11} parent=1 // pred_region
      _
    $region21: #{uniter_encoder_forward.11} parent=1 // pred_fallthru
      _
    // Predicated region
    $region22: #{uniter_encoder_forward.11} parent=1 // pred_check
      _
    $region23: #{uniter_encoder_forward.11} parent=1 // pred_check_branch
      %29 = sbr.rel (0) target = $region25
    $region24: #{uniter_encoder_forward.11} parent=1 // pred_region
      _
    $region25: #{uniter_encoder_forward.11} parent=1 // pred_fallthru
      _
    // Predicated region
    $region26: #{uniter_encoder_forward.11} parent=1 // pred_check
      _
    $region27: #{uniter_encoder_forward.11} parent=1 // pred_check_branch
      %31 = sbr.rel (0) target = $region29
    $region28: #{uniter_encoder_forward.11} parent=1 // pred_region
      _
    $region29: #{uniter_encoder_forward.11} parent=1 // pred_fallthru
      _
    // Predicated region
    $region30: #{uniter_encoder_forward.11} parent=1 // pred_check
      _
    $region31: #{uniter_encoder_forward.11} parent=1 // pred_check_branch
      %33 = sbr.rel (0) target = $region33
    $region32: #{uniter_encoder_forward.11} parent=1 // pred_region
      _
    $region33: #{uniter_encoder_forward.11} parent=1 // pred_fallthru
      _
    // Predicated region
    $region34: #{uniter_encoder_forward.11} parent=1 // pred_check
      _
    $region35: #{uniter_encoder_forward.11} parent=1 // pred_check_branch
      %35 = sbr.rel (0) target = $region37
    $region36: #{uniter_encoder_forward.11} parent=1 // pred_region
      _
    $region37: #{uniter_encoder_forward.11} parent=1 // pred_fallthru
      _
    // Predicated region
    $region38: #{uniter_encoder_forward.11} parent=1 // pred_check
      _
    $region39: #{uniter_encoder_forward.11} parent=1 // pred_check_branch
      %37 = sbr.rel (0) target = $region41
    $region40: #{uniter_encoder_forward.11} parent=1 // pred_region
      _
    $region41: #{uniter_encoder_forward.11} parent=1 // pred_fallthru
      _
    // Predicated region
    $region42: #{uniter_encoder_forward.11} parent=1 // pred_check
      _
    $region43: #{uniter_encoder_forward.11} parent=1 // pred_check_branch
      %39 = sbr.rel (0) target = $region45
    $region44: #{uniter_encoder_forward.11} parent=1 // pred_region
      _
    $region45: #{uniter_encoder_forward.11} parent=1 // pred_fallthru
      _
    // Predicated region
    $region46: #{uniter_encoder_forward.11} parent=1 // pred_check
      _
    $region47: #{uniter_encoder_forward.11} parent=1 // pred_check_branch
      %41 = sbr.rel (0) target = $region49
    $region48: #{uniter_encoder_forward.11} parent=1 // pred_region
      _
    $region49: #{uniter_encoder_forward.11} parent=1 // pred_fallthru
      _
    %v43 = vld [vmem:[%s0] sm:$0xff]
    %v44 = vld [vmem:[%s0 + $0x8] sm:$0xff]
    %v45 = vld [vmem:[%s1] sm:$0xf]
    %v46 = vld [vmem:[%s1 + $0x4] sm:$0xf]
    %v47 = vld [vmem:[%s2] sm:$0xf]
    %v48 = vld [vmem:[%s2 + $0x4] sm:$0xf]
    %v49 = vld [vmem:[%s2 + $0x8] sm:$0xf]
    %v50 = vld [vmem:[%s2 + $0xc] sm:$0xf]
    %v51 = vld [vmem:[%s3] sm:$0x1]
    %v53 = vlaneseq
    %v54 = vshrl.u32 %v53, 7
    %v55 = vsub.s32 0, %v54
    %v56 = vrot.slane %v51, %v55
    %v60 = vunpack.c.l.b16 %v45
    %v61 = vunpack.c.l.b16 %v46
    %v62 = vpack.c.b16 %v61, %v60
    %v67 = vunpack.c.l.b16 %v47
    %v68 = vunpack.c.l.b16 %v48
    %v69 = vunpack.c.l.b16 %v49
    %v70 = vunpack.c.l.b16 %v50
    %v71 = vpack.c.b16 %v68, %v67
    %v72 = vpack.c.b16 %v70, %v69
    %vm75 = vcmask 261120
    %v77 = vsel %vm75, %v62, 0
    %79 = vmatprep.subr.bf16.mxu0 0
    %80 = vmatpush1.bf16.msra.mxu0 %v71
    %81 = vmatprep.subr.bf16.mxu0 0
    %82 = vmatpush1.bf16.msra.mxu0 %v72
    %83 = vmatprep.subr.bf16.mxu0 0
    %84 = vmatpush1.bf16.msra.mxu0 0
    %85 = vmatprep.subr.bf16.mxu0 0
    %86 = vmatpush1.bf16.msra.mxu0 0
    %87 = vmatprep.subr.bf16.mxu0 0
    %88 = vmatpush1.bf16.msra.mxu0 0
    %89 = vmatprep.subr.bf16.mxu0 0
    %90 = vmatpush1.bf16.msra.mxu0 0
    %91 = vmatprep.subr.bf16.mxu0 0
    %92 = vmatpush1.bf16.msra.mxu0 0
    %93 = vmatprep.subr.bf16.mxu0 0
    %94 = vmatpush1.bf16.msra.mxu0 0
    %95 = vmatprep.subr.bf16.mxu0 0
    %96 = vmatpush1.bf16.msra.mxu0 0
    %97 = vmatprep.subr.bf16.mxu0 0
    %98 = vmatpush1.bf16.msra.mxu0 0
    %99 = vmatprep.subr.bf16.mxu0 0
    %100 = vmatpush1.bf16.msra.mxu0 0
    %101 = vmatprep.subr.bf16.mxu0 0
    %102 = vmatpush1.bf16.msra.mxu0 0
    %103 = vmatprep.subr.bf16.mxu0 0
    %104 = vmatpush1.bf16.msra.mxu0 0
    %105 = vmatprep.subr.bf16.mxu0 0
    %106 = vmatpush1.bf16.msra.mxu0 0
    %107 = vmatprep.subr.bf16.mxu0 0
    %108 = vmatpush1.bf16.msra.mxu0 0
    %109 = vmatprep.subr.bf16.mxu0 0
    %110 = vmatpush1.bf16.msra.mxu0 0
    %111 = vmatprep.mubr.bf16.mxu0 0
    %112 = vmatmul.mubr.bf16.gmra.mrb[0].mxu0 %v77
    %v113 = vpop.f32.mrb[0].mxu0
    %v114 = vadd.f32 %v56, %v113
    %v115 = vpop.f32.mrb[0].mxu0
    %v116 = vpop.f32.mrb[0].mxu0
    %v117 = vadd.f32 %v56, %v116
    %v118 = vpop.f32.mrb[0].mxu0
    %119 = vdwg.mxu0
    %v120 = vadd.f32 %v114, %v43
    %v121 = vadd.f32 %v117, %v44
    %v122 = vld [vmem:[%s4] sm:$0x1]
    %v123 = vld [vmem:[%s5] sm:$0x1]
    %v124 = vsel %vm75, %v120, 0.0
    %125 = vadd.xlane.f32.xlu0 %v124
    %v126 = vpop.xlane.xlu0 %125
    %v127 = vsel %vm75, %v121, 0.0
    %128 = vadd.xlane.f32.xlu0 %v127
    %v129 = vpop.xlane.xlu0 %128
    %v130 = vrcp.pop 32.0
    %v131 = vmul.f32 %v126, %v130
    %v132 = vmul.f32 %v129, %v130
    %v133 = vsub.f32 %v120, %v131
    %v134 = vsub.f32 %v121, %v132
    %v135 = vmul.f32 %v133, %v133
    %v136 = vmul.f32 %v134, %v134
    %v137 = vsel %vm75, %v135, 0.0
    %138 = vadd.xlane.f32.xlu0 %v137
    %v139 = vpop.xlane.xlu0 %138
    %v140 = vsel %vm75, %v136, 0.0
    %141 = vadd.xlane.f32.xlu0 %v140
    %v142 = vpop.xlane.xlu0 %141
    %v143 = vmul.f32 %v139, %v130
    %v144 = vmul.f32 %v142, %v130
    %v145 = vadd.f32 %v143, 1e-12
    %v146 = vadd.f32 %v144, 1e-12
    %v147 = vrsqrt.pop %v145
    %v148 = vrsqrt.pop %v146
    %v149 = vmul.f32 %v133, %v147
    %v150 = vmul.f32 %v134, %v148
    %v152 = vlaneseq
    %v153 = vshrl.u32 %v152, 7
    %v154 = vsub.s32 0, %v153
    %v155 = vrot.slane %v122, %v154
    %v157 = vmul.f32 %v149, %v155
    %v158 = vmul.f32 %v150, %v155
    %v160 = vlaneseq
    %v161 = vshrl.u32 %v160, 7
    %v162 = vsub.s32 0, %v161
    %v163 = vrot.slane %v123, %v162
    %v165 = vadd.f32 %v157, %v163
    %v166 = vadd.f32 %v158, %v163
    %v167 = vpack.c.bf16 %v166, %v165
    %v168 = vld [vmem:[%s6] sm:$0xf]
    %v169 = vld [vmem:[%s6 + $0x4] sm:$0xf]
    %v170 = vld [vmem:[%s6 + $0x8] sm:$0xf]
    %v171 = vld [vmem:[%s6 + $0xc] sm:$0xf]
    %v172 = vld [vmem:[%s7] sm:$0x1]
    %v174 = vlaneseq
    %v175 = vshrl.u32 %v174, 7
    %v176 = vsub.s32 0, %v175
    %v177 = vrot.slane %v172, %v176
    %v183 = vunpack.c.l.b16 %v168
    %v184 = vunpack.c.l.b16 %v169
    %v185 = vunpack.c.l.b16 %v170
    %v186 = vunpack.c.l.b16 %v171
    %v187 = vpack.c.b16 %v184, %v183
    %v188 = vpack.c.b16 %v186, %v185
    %v192 = vsel %vm75, %v167, 0
    %194 = vmatprep.subr.bf16.mxu0 0
    %195 = vmatpush1.bf16.msra.mxu0 %v187
    %196 = vmatprep.subr.bf16.mxu0 0
    %197 = vmatpush1.bf16.msra.mxu0 %v188
    %198 = vmatprep.subr.bf16.mxu0 0
    %199 = vmatpush1.bf16.msra.mxu0 0
    %200 = vmatprep.subr.bf16.mxu0 0
    %201 = vmatpush1.bf16.msra.mxu0 0
    %202 = vmatprep.subr.bf16.mxu0 0
    %203 = vmatpush1.bf16.msra.mxu0 0
    %204 = vmatprep.subr.bf16.mxu0 0
    %205 = vmatpush1.bf16.msra.mxu0 0
    %206 = vmatprep.subr.bf16.mxu0 0
    %207 = vmatpush1.bf16.msra.mxu0 0
    %208 = vmatprep.subr.bf16.mxu0 0
    %209 = vmatpush1.bf16.msra.mxu0 0
    %210 = vmatprep.subr.bf16.mxu0 0
    %211 = vmatpush1.bf16.msra.mxu0 0
    %212 = vmatprep.subr.bf16.mxu0 0
    %213 = vmatpush1.bf16.msra.mxu0 0
    %214 = vmatprep.subr.bf16.mxu0 0
    %215 = vmatpush1.bf16.msra.mxu0 0
    %216 = vmatprep.subr.bf16.mxu0 0
    %217 = vmatpush1.bf16.msra.mxu0 0
    %218 = vmatprep.subr.bf16.mxu0 0
    %219 = vmatpush1.bf16.msra.mxu0 0
    %220 = vmatprep.subr.bf16.mxu0 0
    %221 = vmatpush1.bf16.msra.mxu0 0
    %222 = vmatprep.subr.bf16.mxu0 0
    %223 = vmatpush1.bf16.msra.mxu0 0
    %224 = vmatprep.subr.bf16.mxu0 0
    %225 = vmatpush1.bf16.msra.mxu0 0
    %226 = vmatprep.mubr.bf16.mxu0 0
    %227 = vmatmul.mubr.bf16.gmra.mrb[0].mxu0 %v192
    %v228 = vpop.f32.mrb[0].mxu0
    %v229 = vadd.f32 %v177, %v228
    %v230 = vpop.f32.mrb[0].mxu0
    %v231 = vpop.f32.mrb[0].mxu0
    %v232 = vadd.f32 %v177, %v231
    %v233 = vpop.f32.mrb[0].mxu0
    %234 = vdwg.mxu0
    %v235 = vmul.f32 %v229, 0.5
    %v236 = vmul.f32 %v232, 0.5
    %v237 = vmul.f32 %v229, 0.70710677
    %v238 = vmul.f32 %v232, 0.70710677
    %v239 = verf.f32.pop %v237
    %v240 = verf.f32.pop %v238
    %v241 = vadd.f32 %v239, 1.0
    %v242 = vadd.f32 %v240, 1.0
    %v243 = vmul.f32 %v235, %v241
    %v244 = vmul.f32 %v236, %v242
    %v245 = vpack.c.bf16 %v244, %v243
    %v246 = vld [vmem:[%s8] sm:$0xf]
    %v247 = vld [vmem:[%s8 + $0x4] sm:$0xf]
    %v248 = vld [vmem:[%s8 + $0x8] sm:$0xf]
    %v249 = vld [vmem:[%s8 + $0xc] sm:$0xf]
    %v250 = vld [vmem:[%s8 + $0x10] sm:$0xf]
    %v251 = vld [vmem:[%s8 + $0x14] sm:$0xf]
    %v252 = vld [vmem:[%s8 + $0x18] sm:$0xf]
    %v253 = vld [vmem:[%s8 + $0x1c] sm:$0xf]
    %v254 = vld [vmem:[%s9] sm:$0x1]
    %v256 = vlaneseq
    %v257 = vshrl.u32 %v256, 7
    %v258 = vsub.s32 0, %v257
    %v259 = vrot.slane %v254, %v258
    %v269 = vunpack.c.l.b16 %v246
    %v270 = vunpack.c.l.b16 %v247
    %v271 = vunpack.c.l.b16 %v248
    %v272 = vunpack.c.l.b16 %v249
    %v273 = vunpack.c.l.b16 %v250
    %v274 = vunpack.c.l.b16 %v251
    %v275 = vunpack.c.l.b16 %v252
    %v276 = vunpack.c.l.b16 %v253
    %v277 = vpack.c.b16 %v270, %v269
    %v278 = vpack.c.b16 %v272, %v271
    %v279 = vpack.c.b16 %v274, %v273
    %v280 = vpack.c.b16 %v276, %v275
    %vm285 = vcmask 523264
    %v287 = vsel %vm285, %v245, 0
    %289 = vmatprep.subr.bf16.mxu0 0
    %290 = vmatpush1.bf16.msra.mxu0 %v277
    %291 = vmatprep.subr.bf16.mxu0 0
    %292 = vmatpush1.bf16.msra.mxu0 %v278
    %293 = vmatprep.subr.bf16.mxu0 0
    %294 = vmatpush1.bf16.msra.mxu0 %v279
    %295 = vmatprep.subr.bf16.mxu0 0
    %296 = vmatpush1.bf16.msra.mxu0 %v280
    %297 = vmatprep.subr.bf16.mxu0 0
    %298 = vmatpush1.bf16.msra.mxu0 0
    %299 = vmatprep.subr.bf16.mxu0 0
    %300 = vmatpush1.bf16.msra.mxu0 0
    %301 = vmatprep.subr.bf16.mxu0 0
    %302 = vmatpush1.bf16.msra.mxu0 0
    %303 = vmatprep.subr.bf16.mxu0 0
    %304 = vmatpush1.bf16.msra.mxu0 0
    %305 = vmatprep.subr.bf16.mxu0 0
    %306 = vmatpush1.bf16.msra.mxu0 0
    %307 = vmatprep.subr.bf16.mxu0 0
    %308 = vmatpush1.bf16.msra.mxu0 0
    %309 = vmatprep.subr.bf16.mxu0 0
    %310 = vmatpush1.bf16.msra.mxu0 0
    %311 = vmatprep.subr.bf16.mxu0 0
    %312 = vmatpush1.bf16.msra.mxu0 0
    %313 = vmatprep.subr.bf16.mxu0 0
    %314 = vmatpush1.bf16.msra.mxu0 0
    %315 = vmatprep.subr.bf16.mxu0 0
    %316 = vmatpush1.bf16.msra.mxu0 0
    %317 = vmatprep.subr.bf16.mxu0 0
    %318 = vmatpush1.bf16.msra.mxu0 0
    %319 = vmatprep.subr.bf16.mxu0 0
    %320 = vmatpush1.bf16.msra.mxu0 0
    %321 = vmatprep.mubr.bf16.mxu0 0
    %322 = vmatmul.mubr.bf16.gmra.mrb[0].mxu0 %v287
    %v323 = vpop.f32.mrb[0].mxu0
    %v324 = vadd.f32 %v259, %v323
    %v325 = vpop.f32.mrb[0].mxu0
    %v326 = vpop.f32.mrb[0].mxu0
    %v327 = vadd.f32 %v259, %v326
    %v328 = vpop.f32.mrb[0].mxu0
    %329 = vdwg.mxu0
    %v330 = vadd.f32 %v324, %v165
    %v331 = vadd.f32 %v327, %v166
    %v332 = vld [vmem:[%s10] sm:$0x1]
    %v333 = vld [vmem:[%s11] sm:$0x1]
    %v334 = vsel %vm75, %v330, 0.0
    %335 = vadd.xlane.f32.xlu0 %v334
    %v336 = vpop.xlane.xlu0 %335
    %v337 = vsel %vm75, %v331, 0.0
    %338 = vadd.xlane.f32.xlu0 %v337
    %v339 = vpop.xlane.xlu0 %338
    %v340 = vmul.f32 %v336, %v130
    %v341 = vmul.f32 %v339, %v130
    %v342 = vsub.f32 %v330, %v340
    %v343 = vsub.f32 %v331, %v341
    %v344 = vmul.f32 %v342, %v342
    %v345 = vmul.f32 %v343, %v343
    %v346 = vsel %vm75, %v344, 0.0
    %347 = vadd.xlane.f32.xlu0 %v346
    %v348 = vpop.xlane.xlu0 %347
    %v349 = vsel %vm75, %v345, 0.0
    %350 = vadd.xlane.f32.xlu0 %v349
    %v351 = vpop.xlane.xlu0 %350
    %v352 = vmul.f32 %v348, %v130
    %v353 = vmul.f32 %v351, %v130
    %v354 = vadd.f32 %v352, 1e-12
    %v355 = vadd.f32 %v353, 1e-12
    %v356 = vrsqrt.pop %v354
    %v357 = vrsqrt.pop %v355
    %v358 = vmul.f32 %v342, %v356
    %v359 = vmul.f32 %v343, %v357
    %v361 = vlaneseq
    %v362 = vshrl.u32 %v361, 7
    %v363 = vsub.s32 0, %v362
    %v364 = vrot.slane %v332, %v363
    %v366 = vmul.f32 %v358, %v364
    %v367 = vmul.f32 %v359, %v364
    %v369 = vlaneseq
    %v370 = vshrl.u32 %v369, 7
    %v371 = vsub.s32 0, %v370
    %v372 = vrot.slane %v333, %v371
    %v374 = vadd.f32 %v366, %v372
    %v375 = vadd.f32 %v367, %v372
    %376 = vst.msk [vmem:[#allocation2] sm:$0xff] %vm75, %v374
    %377 = vst.msk [vmem:[#allocation2 + $0x8] sm:$0xff] %vm75, %v375
    // Predicated region
    $region50: #{uniter_encoder_forward.11} parent=1 // pred_check
      _
    $region51: #{uniter_encoder_forward.11} parent=1 // pred_check_branch
      %379 = sbr.rel (0) target = $region53
    $region52: #{uniter_encoder_forward.11} parent=1 // pred_region
      %s381 = ssub.s32 256, 256
      %382 = vsyncadd [#allocation3], %s381
      %s383 = sshll.u32 [#allocation2], 4
      %s384 = int_to_ptr.vmem [resolvable:$true] %s383
      %389 = dma.vmem_to_hbm [thread:$0]  %s384, 256, %s12, [#allocation3], 128, 128, 8
    $region53: #{uniter_encoder_forward.11} parent=1 // pred_fallthru
      _
    // Predicated region
    $region54: #{uniter_encoder_forward.11} parent=1 // pred_check
      _
    $region55: #{uniter_encoder_forward.11} parent=1 // pred_check_branch
      %391 = sbr.rel (0) target = $region57
    $region56: #{uniter_encoder_forward.11} parent=1 // pred_region
      %392 = dma.done [#allocation3], 256
    $region57: #{uniter_encoder_forward.11} parent=1 // pred_fallthru
      _
    %393 = vsyncpa [#allocation3], 1

</llo_original>
